<compile_context>
chip_gen: v7x
topology: tpu7x:2x2x1
jax: 0.10.0
libtpu: 0.0.40
codegen_flags: <defaults>
</compile_context>

<pallas_src>
import jax
import jax.numpy as jnp
from jax.experimental import pallas as pl
from jax.experimental.pallas import tpu as pltpu

# ----------------------------- configuration --------------------------------
B, SQ, SKV = 2, 8, 16          # batch, decoder seq len, encoder (vision) seq len
H = 32                         # hidden_size
N_HEADS = 4                    # num_attention_heads
N_KV = 2                       # num_kv_heads (GQA)
D = 8                          # head_size
FFN = 64                       # ffn_hidden_size
EPS = 1e-5                     # layernorm_eps
RES_SCALE = 1.0                # residual_scaling
Q_SCALING = 1.0                # q_scaling


# ------------------------------ Pallas kernel --------------------------------
def block_kernel(hid_ref, enc_ref, gm_ref, ln_ref,
                 wq_ref, wkv_ref, wo_ref, wfcg_ref, wproj_ref,
                 out_ref):
    f32 = jnp.float32
    bf16 = jnp.bfloat16

    bb = hid_ref.shape[0]               # batch rows folded into this block
    rows_q = bb * SQ
    rows_kv = bb * SKV

    x = hid_ref[...].astype(f32).reshape(rows_q, H)       # (rows_q, H)
    enc = enc_ref[...].astype(f32).reshape(rows_kv, H)    # (rows_kv, H)
    gm = gm_ref[...].astype(f32).reshape(rows_q, 2)
    attn_gm = gm[:, 0:1]   # mask * tanh(gate_attn), per row
    ffn_gm = gm[:, 1:2]    # mask * tanh(gate_ffwd), per row

    w_in_ln = ln_ref[0:1, :]            # (1, H)
    w_post_ln = ln_ref[1:2, :]          # (1, H)
    q_ln_w = ln_ref[2:3, :D]            # (1, D)
    k_ln_w = ln_ref[3:4, :D]            # (1, D)

    def rms(v, w):                      # fp32 RmsNorm over last axis
        var = jnp.mean(v * v, axis=-1, keepdims=True)
        return v * jax.lax.rsqrt(var + EPS) * w

    residual = x * RES_SCALE
    xn = rms(x, w_in_ln)

    # Fused projections: bf16 operands on the MXU, fp32 accumulation.
    q = jnp.dot(xn.astype(bf16), wq_ref[...],
                preferred_element_type=f32)                # (rows_q, NH*D)
    kv = jnp.dot(enc.astype(bf16), wkv_ref[...],
                 preferred_element_type=f32)               # (rows_kv, 2*NKV*D)

    scale = 1.0 / (float(D) ** 0.5 * Q_SCALING)
    hpg = N_HEADS // N_KV

    # Attention: one score matmul + one context matmul per (batch, kv-group).
    # Query heads of the same group are stacked along the sublane axis.
    ctx_rows = []
    for b in range(bb):
        qb = q[b * SQ:(b + 1) * SQ, :]
        kvb = kv[b * SKV:(b + 1) * SKV, :]
        head_tiles = []
        for g in range(N_KV):
            kh = rms(kvb[:, g * D:(g + 1) * D], k_ln_w)                      # (SKV, D) fp32
            vh = kvb[:, N_KV * D + g * D:N_KV * D + (g + 1) * D].astype(bf16)
            qg = jnp.concatenate(
                [rms(qb[:, h * D:(h + 1) * D], q_ln_w)
                 for h in range(g * hpg, (g + 1) * hpg)], axis=0)            # (hpg*SQ, D)
            s = jnp.dot(qg.astype(bf16), kh.T.astype(bf16),
                        preferred_element_type=f32) * scale                  # (hpg*SQ, SKV)
            s = s - jnp.max(s, axis=-1, keepdims=True)
            p = jnp.exp(s)
            p = p * pl.reciprocal(jnp.sum(p, axis=-1, keepdims=True), approx=True)
            ctx = jnp.dot(p.astype(bf16), vh, preferred_element_type=f32)    # (hpg*SQ, D)
            head_tiles.extend(ctx[j * SQ:(j + 1) * SQ, :] for j in range(hpg))
        ctx_rows.append(jnp.concatenate(head_tiles, axis=1))                 # (SQ, NH*D)
    ctx_all = jnp.concatenate(ctx_rows, axis=0)                              # (rows_q, NH*D)

    # Single fused output projection.
    attn_out = jnp.dot(ctx_all.astype(bf16), wo_ref[...],
                       preferred_element_type=f32)                           # (rows_q, H)
    h1 = residual + attn_gm * attn_out

    # Second residual branch: post_layernorm + GatedMLP (gated-silu).
    residual2 = h1 * RES_SCALE
    h1n = rms(h1, w_post_ln)
    fcg = jnp.dot(h1n.astype(bf16), wfcg_ref[...],
                  preferred_element_type=f32)                                # (rows_q, 2*FFN)
    fc = fcg[:, :FFN]
    gate = fcg[:, FFN:]
    inter = (fc * jax.nn.sigmoid(fc)) * gate
    mlp_out = jnp.dot(inter.astype(bf16), wproj_ref[...],
                      preferred_element_type=f32)                            # (rows_q, H)

    out = residual2 + ffn_gm * mlp_out    # no_ffn == False
    out_ref[...] = out.reshape(bb, SQ, H).astype(out_ref.dtype)


# ------------------------------ host wrapper ---------------------------------
def _pick_batch_block(batch):
    # v7x has 2 TensorCores/chip -> keep grid=(B,) "parallel" so batches shard
    # across cores.  v5e/v6e run the grid serially on one TC -> fold the whole
    # batch into one block to save per-grid-step overhead and feed bigger dots.
    try:
        kind = jax.devices()[0].device_kind.lower()
    except Exception:
        kind = ""
    return 1 if "v7" in kind else batch


def cross_attention_block(hid, enc, mask, p, batch_block=None):
    f32 = jnp.float32
    bf16 = jnp.bfloat16

    bb = batch_block if batch_block is not None else _pick_batch_block(B)
    nb = B // bb

    # Host-side packing (in a real model this is precomputed at weight-load time).
    ln_pack = jnp.zeros((4, H), f32)
    ln_pack = ln_pack.at[0, :].set(p["w_in_ln"].astype(f32))
    ln_pack = ln_pack.at[1, :].set(p["w_post_ln"].astype(f32))
    ln_pack = ln_pack.at[2, :D].set(p["q_ln"].astype(f32))
    ln_pack = ln_pack.at[3, :D].set(p["k_ln"].astype(f32))

    wq = p["wq"].astype(bf16)
    wkv = jnp.concatenate([p["wk"], p["wv"]], axis=1).astype(bf16)      # (H, 2*NKV*D)
    wo = p["wo"].astype(bf16)
    wfcg = jnp.concatenate([p["wfc"], p["wgate"]], axis=1).astype(bf16)  # (H, 2*FFN)
    wproj = p["wproj"].astype(bf16)

    ga = jnp.tanh(p["gate_attn"].astype(f32))[0]
    gf = jnp.tanh(p["gate_ffwd"].astype(f32))[0]
    gm = jnp.concatenate([mask.astype(f32) * ga, mask.astype(f32) * gf],
                         axis=-1)                                        # (B, SQ, 2)

    in_specs = [
        pl.BlockSpec((bb, SQ, H), lambda i: (i, 0, 0)),          # hidden_states
        pl.BlockSpec((bb, SKV, H), lambda i: (i, 0, 0)),         # encoder_output
        pl.BlockSpec((bb, SQ, 2), lambda i: (i, 0, 0)),          # mask*tanh(gates)
        pl.BlockSpec((4, H), lambda i: (0, 0)),                  # packed LN weights
        pl.BlockSpec((H, N_HEADS * D), lambda i: (0, 0)),        # Wq
        pl.BlockSpec((H, 2 * N_KV * D), lambda i: (0, 0)),       # Wk|Wv
        pl.BlockSpec((N_HEADS * D, H), lambda i: (0, 0)),        # Wo
        pl.BlockSpec((H, 2 * FFN), lambda i: (0, 0)),            # Wfc|Wgate
        pl.BlockSpec((FFN, H), lambda i: (0, 0)),                # Wproj
    ]
    out_spec = pl.BlockSpec((bb, SQ, H), lambda i: (i, 0, 0))

    return pl.pallas_call(
        block_kernel,
        out_shape=jax.ShapeDtypeStruct((B, SQ, H), jnp.float32),
        grid=(nb,),
        in_specs=in_specs,
        out_specs=out_spec,
        compiler_params=pltpu.CompilerParams(dimension_semantics=("parallel",)),
    )(hid, enc, gm, ln_pack, wq, wkv, wo, wfcg, wproj)


# --------------------------- pure-JAX reference ------------------------------
# Matches the kernel's numerics: bf16 MXU operands, fp32 accumulation and fp32
# layernorm/softmax math (the kernel additionally uses an approximate EUP
# reciprocal for the softmax denominator).
def reference(hid, enc, mask, p):
    f32 = jnp.float32
    bf16 = jnp.bfloat16

    def bdot(a, b):
        return jnp.dot(a.astype(bf16), b.astype(bf16), preferred_element_type=f32)

    def rms(x, w):
        xf = x.astype(f32)
        return xf * jax.lax.rsqrt(jnp.mean(xf * xf, -1, keepdims=True) + EPS) * w

    residual = hid.astype(f32) * RES_SCALE
    xn = rms(hid, p["w_in_ln"])
    q = bdot(xn.reshape(B * SQ, H), p["wq"]).reshape(B, SQ, N_HEADS, D)
    k = bdot(enc.reshape(B * SKV, H), p["wk"]).reshape(B, SKV, N_KV, D)
    v = bdot(enc.reshape(B * SKV, H), p["wv"]).reshape(B, SKV, N_KV, D)
    q = rms(q, p["q_ln"])
    k = rms(k, p["k_ln"])
    rep = N_HEADS // N_KV
    k = jnp.repeat(k, rep, axis=2)
    v = jnp.repeat(v, rep, axis=2)
    s = jnp.einsum("bqhd,bkhd->bhqk", q.astype(bf16), k.astype(bf16),
                   preferred_element_type=f32) / (float(D) ** 0.5 * Q_SCALING)
    a = jax.nn.softmax(s, axis=-1)
    ctx = jnp.einsum("bhqk,bkhd->bqhd", a.astype(bf16), v.astype(bf16),
                     preferred_element_type=f32).reshape(B, SQ, N_HEADS * D)
    attn_out = bdot(ctx.reshape(B * SQ, -1), p["wo"]).reshape(B, SQ, H) * mask
    h1 = residual + jnp.tanh(p["gate_attn"].astype(f32))[0] * attn_out
    residual2 = h1 * RES_SCALE
    h1n = rms(h1, p["w_post_ln"])
    fc = bdot(h1n.reshape(B * SQ, H), p["wfc"])
    gate = bdot(h1n.reshape(B * SQ, H), p["wgate"])
    inter = (fc * jax.nn.sigmoid(fc)) * gate
    mlp_out = bdot(inter, p["wproj"]).reshape(B, SQ, H) * mask
    return residual2 + jnp.tanh(p["gate_ffwd"].astype(f32))[0] * mlp_out


# ---------------------------------- main --------------------------------------
if __name__ == "__main__":
    key = jax.random.PRNGKey(0)
    ks = jax.random.split(key, 16)

    def nrm(k, shape, scale=0.05):
        return jax.random.normal(k, shape, dtype=jnp.float32) * scale

    params = {
        "w_in_ln":   jnp.ones((H,), jnp.float32) + nrm(ks[0], (H,)),
        "wq":        nrm(ks[1], (H, N_HEADS * D)),
        "wk":        nrm(ks[2], (H, N_KV * D)),
        "wv":        nrm(ks[3], (H, N_KV * D)),
        "q_ln":      jnp.ones((D,), jnp.float32) + nrm(ks[4], (D,)),
        "k_ln":      jnp.ones((D,), jnp.float32) + nrm(ks[5], (D,)),
        "wo":        nrm(ks[6], (N_HEADS * D, H)),
        "gate_attn": jnp.array([0.3], jnp.float32),
        "w_post_ln": jnp.ones((H,), jnp.float32) + nrm(ks[7], (H,)),
        "wfc":       nrm(ks[8], (H, FFN)),
        "wgate":     nrm(ks[9], (H, FFN)),
        "wproj":     nrm(ks[10], (FFN, H)),
        "gate_ffwd": jnp.array([-0.2], jnp.float32),
    }

    hidden_states = jax.random.normal(ks[11], (B, SQ, H), dtype=jnp.float32)
    encoder_output = jax.random.normal(ks[12], (B, SKV, H), dtype=jnp.float32)
    full_text_row_masked_out_mask = jax.random.bernoulli(
        ks[13], p=0.8, shape=(B, SQ, 1)).astype(jnp.float32)

    out = cross_attention_block(hidden_states, encoder_output,
                                full_text_row_masked_out_mask, params)
    out = jax.block_until_ready(out)

    ref = reference(hidden_states, encoder_output,
                    full_text_row_masked_out_mask, params)
    assert out.shape == (B, SQ, H)
    max_err = float(jnp.max(jnp.abs(out - ref)))
    assert max_err < 1e-2, max_err

    print("KERNEL_OK")
</pallas_src>

<mosaic_0001>
module attributes {stable_mosaic.version = 11 : i64} {
  func.func @block_kernel(%arg0: i32, %arg1: memref<2x8x32xf32, #tpu.memory_space<vmem>>, %arg2: memref<2x16x32xf32, #tpu.memory_space<vmem>>, %arg3: memref<2x8x2xf32, #tpu.memory_space<vmem>>, %arg4: memref<4x32xf32, #tpu.memory_space<vmem>>, %arg5: memref<32x32xbf16, #tpu.memory_space<vmem>>, %arg6: memref<32x32xbf16, #tpu.memory_space<vmem>>, %arg7: memref<32x32xbf16, #tpu.memory_space<vmem>>, %arg8: memref<32x128xbf16, #tpu.memory_space<vmem>>, %arg9: memref<64x32xbf16, #tpu.memory_space<vmem>>, %arg10: memref<2x8x32xf32, #tpu.memory_space<vmem>>) attributes {dimension_semantics = [#tpu.dimension_semantics<parallel>], iteration_bounds = array<i64: 1>, scalar_prefetch = 0 : i64, scratch_operands = 0 : i64, tpu.core_type = #tpu.core_type<tc>, window_params = [{transform_indices = @transform_0, window_bounds = array<i64: 2, 8, 32>}, {transform_indices = @transform_1, window_bounds = array<i64: 2, 16, 32>}, {transform_indices = @transform_2, window_bounds = array<i64: 2, 8, 2>}, {pipeline_mode = #tpu.pipeline_mode<synchronous>, transform_indices = @transform_3, window_bounds = array<i64: 4, 32>}, {pipeline_mode = #tpu.pipeline_mode<synchronous>, transform_indices = @transform_4, window_bounds = array<i64: 32, 32>}, {pipeline_mode = #tpu.pipeline_mode<synchronous>, transform_indices = @transform_5, window_bounds = array<i64: 32, 32>}, {pipeline_mode = #tpu.pipeline_mode<synchronous>, transform_indices = @transform_6, window_bounds = array<i64: 32, 32>}, {pipeline_mode = #tpu.pipeline_mode<synchronous>, transform_indices = @transform_7, window_bounds = array<i64: 32, 128>}, {pipeline_mode = #tpu.pipeline_mode<synchronous>, transform_indices = @transform_8, window_bounds = array<i64: 64, 32>}, {transform_indices = @transform_9, window_bounds = array<i64: 2, 8, 32>}]} {
    %c0 = arith.constant 0 : index
    %c0_0 = arith.constant 0 : index
    %c0_1 = arith.constant 0 : index
    %0 = vector.load %arg1[%c0, %c0_0, %c0_1] : memref<2x8x32xf32, #tpu.memory_space<vmem>>, vector<2x8x32xf32>
    %1 = vector.shape_cast %0 : vector<2x8x32xf32> to vector<16x32xf32>
    %c0_2 = arith.constant 0 : index
    %c0_3 = arith.constant 0 : index
    %c0_4 = arith.constant 0 : index
    %2 = vector.load %arg2[%c0_2, %c0_3, %c0_4] : memref<2x16x32xf32, #tpu.memory_space<vmem>>, vector<2x16x32xf32>
    %3 = vector.shape_cast %2 : vector<2x16x32xf32> to vector<32x32xf32>
    %c0_5 = arith.constant 0 : index
    %c0_6 = arith.constant 0 : index
    %c0_7 = arith.constant 0 : index
    %4 = vector.load %arg3[%c0_5, %c0_6, %c0_7] : memref<2x8x2xf32, #tpu.memory_space<vmem>>, vector<2x8x2xf32>
    %5 = vector.shape_cast %4 : vector<2x8x2xf32> to vector<16x2xf32>
    %6 = vector.extract_strided_slice %5 {offsets = [0, 0], sizes = [16, 1], strides = [1, 1]} : vector<16x2xf32> to vector<16x1xf32>
    %7 = vector.extract_strided_slice %5 {offsets = [0, 1], sizes = [16, 1], strides = [1, 1]} : vector<16x2xf32> to vector<16x1xf32>
    %c0_8 = arith.constant 0 : index
    %c0_9 = arith.constant 0 : index
    %8 = vector.load %arg4[%c0_8, %c0_9] : memref<4x32xf32, #tpu.memory_space<vmem>>, vector<1x32xf32>
    %c1 = arith.constant 1 : index
    %c0_10 = arith.constant 0 : index
    %9 = vector.load %arg4[%c1, %c0_10] : memref<4x32xf32, #tpu.memory_space<vmem>>, vector<1x32xf32>
    %c2 = arith.constant 2 : index
    %c0_11 = arith.constant 0 : index
    %10 = vector.load %arg4[%c2, %c0_11] : memref<4x32xf32, #tpu.memory_space<vmem>>, vector<1x8xf32>
    %c3 = arith.constant 3 : index
    %c0_12 = arith.constant 0 : index
    %11 = vector.load %arg4[%c3, %c0_12] : memref<4x32xf32, #tpu.memory_space<vmem>>, vector<1x8xf32>
    %cst = arith.constant 1.000000e+00 : f32
    %12 = vector.broadcast %cst : f32 to vector<16x32xf32>
    %13 = arith.mulf %1, %12 : vector<16x32xf32>
    %14 = arith.mulf %1, %1 : vector<16x32xf32>
    %cst_13 = arith.constant dense<0.000000e+00> : vector<16xf32>
    %15 = vector.multi_reduction <add>, %14, %cst_13 [1] : vector<16x32xf32> to vector<16xf32>
    %16 = vector.shape_cast %15 : vector<16xf32> to vector<16x1xf32>
    %cst_14 = arith.constant 3.200000e+01 : f32
    %17 = vector.broadcast %cst_14 : f32 to vector<16x1xf32>
    %18 = arith.divf %16, %17 : vector<16x1xf32>
    %cst_15 = arith.constant 9.99999974E-6 : f32
    %19 = vector.broadcast %cst_15 : f32 to vector<16x1xf32>
    %20 = arith.addf %18, %19 : vector<16x1xf32>
    %21 = math.rsqrt %20 : vector<16x1xf32>
    %22 = vector.broadcast %21 : vector<16x1xf32> to vector<16x32xf32>
    %23 = arith.mulf %1, %22 : vector<16x32xf32>
    %24 = vector.broadcast %8 : vector<1x32xf32> to vector<16x32xf32>
    %25 = arith.mulf %23, %24 : vector<16x32xf32>
    %26 = arith.truncf %25 : vector<16x32xf32> to vector<16x32xbf16>
    %c0_16 = arith.constant 0 : index
    %c0_17 = arith.constant 0 : index
    %27 = vector.load %arg5[%c0_16, %c0_17] : memref<32x32xbf16, #tpu.memory_space<vmem>>, vector<32x32xbf16>
    %cst_18 = arith.constant dense<0.000000e+00> : vector<16x32xf32>
    %28 = tpu.matmul %26, %27, %cst_18 {dimension_numbers = #tpu.dot_dimension_numbers<[1], [0], [0], [1], [0, 0, 1, 1], [], []>} : vector<16x32xbf16>, vector<32x32xbf16>, vector<16x32xf32> -> vector<16x32xf32>
    %29 = arith.truncf %3 : vector<32x32xf32> to vector<32x32xbf16>
    %c0_19 = arith.constant 0 : index
    %c0_20 = arith.constant 0 : index
    %30 = vector.load %arg6[%c0_19, %c0_20] : memref<32x32xbf16, #tpu.memory_space<vmem>>, vector<32x32xbf16>
    %cst_21 = arith.constant dense<0.000000e+00> : vector<32x32xf32>
    %31 = tpu.matmul %29, %30, %cst_21 {dimension_numbers = #tpu.dot_dimension_numbers<[1], [0], [0], [1], [0, 0, 1, 1], [], []>} : vector<32x32xbf16>, vector<32x32xbf16>, vector<32x32xf32> -> vector<32x32xf32>
    %32 = vector.extract_strided_slice %28 {offsets = [0, 0], sizes = [8, 32], strides = [1, 1]} : vector<16x32xf32> to vector<8x32xf32>
    %33 = vector.extract_strided_slice %31 {offsets = [0, 0], sizes = [16, 32], strides = [1, 1]} : vector<32x32xf32> to vector<16x32xf32>
    %34 = vector.extract_strided_slice %33 {offsets = [0, 0], sizes = [16, 8], strides = [1, 1]} : vector<16x32xf32> to vector<16x8xf32>
    %35 = arith.mulf %34, %34 : vector<16x8xf32>
    %cst_22 = arith.constant dense<0.000000e+00> : vector<16xf32>
    %36 = vector.multi_reduction <add>, %35, %cst_22 [1] : vector<16x8xf32> to vector<16xf32>
    %37 = vector.shape_cast %36 : vector<16xf32> to vector<16x1xf32>
    %cst_23 = arith.constant 8.000000e+00 : f32
    %38 = vector.broadcast %cst_23 : f32 to vector<16x1xf32>
    %39 = arith.divf %37, %38 : vector<16x1xf32>
    %cst_24 = arith.constant 9.99999974E-6 : f32
    %40 = vector.broadcast %cst_24 : f32 to vector<16x1xf32>
    %41 = arith.addf %39, %40 : vector<16x1xf32>
    %42 = math.rsqrt %41 : vector<16x1xf32>
    %43 = vector.broadcast %42 : vector<16x1xf32> to vector<16x8xf32>
    %44 = arith.mulf %34, %43 : vector<16x8xf32>
    %45 = vector.broadcast %11 : vector<1x8xf32> to vector<16x8xf32>
    %46 = arith.mulf %44, %45 : vector<16x8xf32>
    %47 = vector.extract_strided_slice %33 {offsets = [0, 16], sizes = [16, 8], strides = [1, 1]} : vector<16x32xf32> to vector<16x8xf32>
    %48 = arith.truncf %47 : vector<16x8xf32> to vector<16x8xbf16>
    %49 = vector.extract_strided_slice %32 {offsets = [0, 0], sizes = [8, 8], strides = [1, 1]} : vector<8x32xf32> to vector<8x8xf32>
    %50 = arith.mulf %49, %49 : vector<8x8xf32>
    %cst_25 = arith.constant dense<0.000000e+00> : vector<8xf32>
    %51 = vector.multi_reduction <add>, %50, %cst_25 [1] : vector<8x8xf32> to vector<8xf32>
    %52 = vector.shape_cast %51 : vector<8xf32> to vector<8x1xf32>
    %cst_26 = arith.constant 8.000000e+00 : f32
    %53 = vector.broadcast %cst_26 : f32 to vector<8x1xf32>
    %54 = arith.divf %52, %53 : vector<8x1xf32>
    %cst_27 = arith.constant 9.99999974E-6 : f32
    %55 = vector.broadcast %cst_27 : f32 to vector<8x1xf32>
    %56 = arith.addf %54, %55 : vector<8x1xf32>
    %57 = math.rsqrt %56 : vector<8x1xf32>
    %58 = vector.broadcast %57 : vector<8x1xf32> to vector<8x8xf32>
    %59 = arith.mulf %49, %58 : vector<8x8xf32>
    %60 = vector.broadcast %10 : vector<1x8xf32> to vector<8x8xf32>
    %61 = arith.mulf %59, %60 : vector<8x8xf32>
    %62 = vector.extract_strided_slice %32 {offsets = [0, 8], sizes = [8, 8], strides = [1, 1]} : vector<8x32xf32> to vector<8x8xf32>
    %63 = arith.mulf %62, %62 : vector<8x8xf32>
    %cst_28 = arith.constant dense<0.000000e+00> : vector<8xf32>
    %64 = vector.multi_reduction <add>, %63, %cst_28 [1] : vector<8x8xf32> to vector<8xf32>
    %65 = vector.shape_cast %64 : vector<8xf32> to vector<8x1xf32>
    %cst_29 = arith.constant 8.000000e+00 : f32
    %66 = vector.broadcast %cst_29 : f32 to vector<8x1xf32>
    %67 = arith.divf %65, %66 : vector<8x1xf32>
    %cst_30 = arith.constant 9.99999974E-6 : f32
    %68 = vector.broadcast %cst_30 : f32 to vector<8x1xf32>
    %69 = arith.addf %67, %68 : vector<8x1xf32>
    %70 = math.rsqrt %69 : vector<8x1xf32>
    %71 = vector.broadcast %70 : vector<8x1xf32> to vector<8x8xf32>
    %72 = arith.mulf %62, %71 : vector<8x8xf32>
    %73 = vector.broadcast %10 : vector<1x8xf32> to vector<8x8xf32>
    %74 = arith.mulf %72, %73 : vector<8x8xf32>
    %75 = tpu.concatenate %61, %74 in 0 : vector<8x8xf32>, vector<8x8xf32> -> vector<16x8xf32>
    %76 = arith.truncf %75 : vector<16x8xf32> to vector<16x8xbf16>
    %77 = tpu.transpose %46, [1, 0] : vector<16x8xf32> -> vector<8x16xf32>
    %78 = arith.truncf %77 : vector<8x16xf32> to vector<8x16xbf16>
    %cst_31 = arith.constant dense<0.000000e+00> : vector<16x16xf32>
    %79 = tpu.matmul %76, %78, %cst_31 {dimension_numbers = #tpu.dot_dimension_numbers<[1], [0], [0], [1], [0, 0, 1, 1], [], []>} : vector<16x8xbf16>, vector<8x16xbf16>, vector<16x16xf32> -> vector<16x16xf32>
    %cst_32 = arith.constant 0.353553385 : f32
    %80 = vector.broadcast %cst_32 : f32 to vector<16x16xf32>
    %81 = arith.mulf %79, %80 : vector<16x16xf32>
    %cst_33 = arith.constant dense<0xFF800000> : vector<16xf32>
    %82 = vector.multi_reduction <maximumf>, %81, %cst_33 [1] : vector<16x16xf32> to vector<16xf32>
    %83 = vector.shape_cast %82 : vector<16xf32> to vector<16x1xf32>
    %84 = vector.broadcast %83 : vector<16x1xf32> to vector<16x16xf32>
    %85 = arith.subf %81, %84 : vector<16x16xf32>
    %86 = math.exp %85 : vector<16x16xf32>
    %cst_34 = arith.constant dense<0.000000e+00> : vector<16xf32>
    %87 = vector.multi_reduction <add>, %86, %cst_34 [1] : vector<16x16xf32> to vector<16xf32>
    %88 = vector.shape_cast %87 : vector<16xf32> to vector<16x1xf32>
    %89 = tpu.reciprocal %88 {approx = true} : vector<16x1xf32> -> vector<16x1xf32>
    %90 = vector.broadcast %89 : vector<16x1xf32> to vector<16x16xf32>
    %91 = arith.mulf %86, %90 : vector<16x16xf32>
    %92 = arith.truncf %91 : vector<16x16xf32> to vector<16x16xbf16>
    %cst_35 = arith.constant dense<0.000000e+00> : vector<16x8xf32>
    %93 = tpu.matmul %92, %48, %cst_35 {dimension_numbers = #tpu.dot_dimension_numbers<[1], [0], [0], [1], [0, 0, 1, 1], [], []>} : vector<16x16xbf16>, vector<16x8xbf16>, vector<16x8xf32> -> vector<16x8xf32>
    %94 = vector.extract_strided_slice %93 {offsets = [0, 0], sizes = [8, 8], strides = [1, 1]} : vector<16x8xf32> to vector<8x8xf32>
    %95 = vector.extract_strided_slice %93 {offsets = [8, 0], sizes = [8, 8], strides = [1, 1]} : vector<16x8xf32> to vector<8x8xf32>
    %96 = vector.extract_strided_slice %33 {offsets = [0, 8], sizes = [16, 8], strides = [1, 1]} : vector<16x32xf32> to vector<16x8xf32>
    %97 = arith.mulf %96, %96 : vector<16x8xf32>
    %cst_36 = arith.constant dense<0.000000e+00> : vector<16xf32>
    %98 = vector.multi_reduction <add>, %97, %cst_36 [1] : vector<16x8xf32> to vector<16xf32>
    %99 = vector.shape_cast %98 : vector<16xf32> to vector<16x1xf32>
    %cst_37 = arith.constant 8.000000e+00 : f32
    %100 = vector.broadcast %cst_37 : f32 to vector<16x1xf32>
    %101 = arith.divf %99, %100 : vector<16x1xf32>
    %cst_38 = arith.constant 9.99999974E-6 : f32
    %102 = vector.broadcast %cst_38 : f32 to vector<16x1xf32>
    %103 = arith.addf %101, %102 : vector<16x1xf32>
    %104 = math.rsqrt %103 : vector<16x1xf32>
    %105 = vector.broadcast %104 : vector<16x1xf32> to vector<16x8xf32>
    %106 = arith.mulf %96, %105 : vector<16x8xf32>
    %107 = vector.broadcast %11 : vector<1x8xf32> to vector<16x8xf32>
    %108 = arith.mulf %106, %107 : vector<16x8xf32>
    %109 = vector.extract_strided_slice %33 {offsets = [0, 24], sizes = [16, 8], strides = [1, 1]} : vector<16x32xf32> to vector<16x8xf32>
    %110 = arith.truncf %109 : vector<16x8xf32> to vector<16x8xbf16>
    %111 = vector.extract_strided_slice %32 {offsets = [0, 16], sizes = [8, 8], strides = [1, 1]} : vector<8x32xf32> to vector<8x8xf32>
    %112 = arith.mulf %111, %111 : vector<8x8xf32>
    %cst_39 = arith.constant dense<0.000000e+00> : vector<8xf32>
    %113 = vector.multi_reduction <add>, %112, %cst_39 [1] : vector<8x8xf32> to vector<8xf32>
    %114 = vector.shape_cast %113 : vector<8xf32> to vector<8x1xf32>
    %cst_40 = arith.constant 8.000000e+00 : f32
    %115 = vector.broadcast %cst_40 : f32 to vector<8x1xf32>
    %116 = arith.divf %114, %115 : vector<8x1xf32>
    %cst_41 = arith.constant 9.99999974E-6 : f32
    %117 = vector.broadcast %cst_41 : f32 to vector<8x1xf32>
    %118 = arith.addf %116, %117 : vector<8x1xf32>
    %119 = math.rsqrt %118 : vector<8x1xf32>
    %120 = vector.broadcast %119 : vector<8x1xf32> to vector<8x8xf32>
    %121 = arith.mulf %111, %120 : vector<8x8xf32>
    %122 = vector.broadcast %10 : vector<1x8xf32> to vector<8x8xf32>
    %123 = arith.mulf %121, %122 : vector<8x8xf32>
    %124 = vector.extract_strided_slice %32 {offsets = [0, 24], sizes = [8, 8], strides = [1, 1]} : vector<8x32xf32> to vector<8x8xf32>
    %125 = arith.mulf %124, %124 : vector<8x8xf32>
    %cst_42 = arith.constant dense<0.000000e+00> : vector<8xf32>
    %126 = vector.multi_reduction <add>, %125, %cst_42 [1] : vector<8x8xf32> to vector<8xf32>
    %127 = vector.shape_cast %126 : vector<8xf32> to vector<8x1xf32>
    %cst_43 = arith.constant 8.000000e+00 : f32
    %128 = vector.broadcast %cst_43 : f32 to vector<8x1xf32>
    %129 = arith.divf %127, %128 : vector<8x1xf32>
    %cst_44 = arith.constant 9.99999974E-6 : f32
    %130 = vector.broadcast %cst_44 : f32 to vector<8x1xf32>
    %131 = arith.addf %129, %130 : vector<8x1xf32>
    %132 = math.rsqrt %131 : vector<8x1xf32>
    %133 = vector.broadcast %132 : vector<8x1xf32> to vector<8x8xf32>
    %134 = arith.mulf %124, %133 : vector<8x8xf32>
    %135 = vector.broadcast %10 : vector<1x8xf32> to vector<8x8xf32>
    %136 = arith.mulf %134, %135 : vector<8x8xf32>
    %137 = tpu.concatenate %123, %136 in 0 : vector<8x8xf32>, vector<8x8xf32> -> vector<16x8xf32>
    %138 = arith.truncf %137 : vector<16x8xf32> to vector<16x8xbf16>
    %139 = tpu.transpose %108, [1, 0] : vector<16x8xf32> -> vector<8x16xf32>
    %140 = arith.truncf %139 : vector<8x16xf32> to vector<8x16xbf16>
    %cst_45 = arith.constant dense<0.000000e+00> : vector<16x16xf32>
    %141 = tpu.matmul %138, %140, %cst_45 {dimension_numbers = #tpu.dot_dimension_numbers<[1], [0], [0], [1], [0, 0, 1, 1], [], []>} : vector<16x8xbf16>, vector<8x16xbf16>, vector<16x16xf32> -> vector<16x16xf32>
    %cst_46 = arith.constant 0.353553385 : f32
    %142 = vector.broadcast %cst_46 : f32 to vector<16x16xf32>
    %143 = arith.mulf %141, %142 : vector<16x16xf32>
    %cst_47 = arith.constant dense<0xFF800000> : vector<16xf32>
    %144 = vector.multi_reduction <maximumf>, %143, %cst_47 [1] : vector<16x16xf32> to vector<16xf32>
    %145 = vector.shape_cast %144 : vector<16xf32> to vector<16x1xf32>
    %146 = vector.broadcast %145 : vector<16x1xf32> to vector<16x16xf32>
    %147 = arith.subf %143, %146 : vector<16x16xf32>
    %148 = math.exp %147 : vector<16x16xf32>
    %cst_48 = arith.constant dense<0.000000e+00> : vector<16xf32>
    %149 = vector.multi_reduction <add>, %148, %cst_48 [1] : vector<16x16xf32> to vector<16xf32>
    %150 = vector.shape_cast %149 : vector<16xf32> to vector<16x1xf32>
    %151 = tpu.reciprocal %150 {approx = true} : vector<16x1xf32> -> vector<16x1xf32>
    %152 = vector.broadcast %151 : vector<16x1xf32> to vector<16x16xf32>
    %153 = arith.mulf %148, %152 : vector<16x16xf32>
    %154 = arith.truncf %153 : vector<16x16xf32> to vector<16x16xbf16>
    %cst_49 = arith.constant dense<0.000000e+00> : vector<16x8xf32>
    %155 = tpu.matmul %154, %110, %cst_49 {dimension_numbers = #tpu.dot_dimension_numbers<[1], [0], [0], [1], [0, 0, 1, 1], [], []>} : vector<16x16xbf16>, vector<16x8xbf16>, vector<16x8xf32> -> vector<16x8xf32>
    %156 = vector.extract_strided_slice %155 {offsets = [0, 0], sizes = [8, 8], strides = [1, 1]} : vector<16x8xf32> to vector<8x8xf32>
    %157 = vector.extract_strided_slice %155 {offsets = [8, 0], sizes = [8, 8], strides = [1, 1]} : vector<16x8xf32> to vector<8x8xf32>
    %158 = tpu.concatenate %94, %95, %156, %157 in 1 : vector<8x8xf32>, vector<8x8xf32>, vector<8x8xf32>, vector<8x8xf32> -> vector<8x32xf32>
    %159 = vector.extract_strided_slice %28 {offsets = [8, 0], sizes = [8, 32], strides = [1, 1]} : vector<16x32xf32> to vector<8x32xf32>
    %160 = vector.extract_strided_slice %31 {offsets = [16, 0], sizes = [16, 32], strides = [1, 1]} : vector<32x32xf32> to vector<16x32xf32>
    %161 = vector.extract_strided_slice %160 {offsets = [0, 0], sizes = [16, 8], strides = [1, 1]} : vector<16x32xf32> to vector<16x8xf32>
    %162 = arith.mulf %161, %161 : vector<16x8xf32>
    %cst_50 = arith.constant dense<0.000000e+00> : vector<16xf32>
    %163 = vector.multi_reduction <add>, %162, %cst_50 [1] : vector<16x8xf32> to vector<16xf32>
    %164 = vector.shape_cast %163 : vector<16xf32> to vector<16x1xf32>
    %cst_51 = arith.constant 8.000000e+00 : f32
    %165 = vector.broadcast %cst_51 : f32 to vector<16x1xf32>
    %166 = arith.divf %164, %165 : vector<16x1xf32>
    %cst_52 = arith.constant 9.99999974E-6 : f32
    %167 = vector.broadcast %cst_52 : f32 to vector<16x1xf32>
    %168 = arith.addf %166, %167 : vector<16x1xf32>
    %169 = math.rsqrt %168 : vector<16x1xf32>
    %170 = vector.broadcast %169 : vector<16x1xf32> to vector<16x8xf32>
    %171 = arith.mulf %161, %170 : vector<16x8xf32>
    %172 = vector.broadcast %11 : vector<1x8xf32> to vector<16x8xf32>
    %173 = arith.mulf %171, %172 : vector<16x8xf32>
    %174 = vector.extract_strided_slice %160 {offsets = [0, 16], sizes = [16, 8], strides = [1, 1]} : vector<16x32xf32> to vector<16x8xf32>
    %175 = arith.truncf %174 : vector<16x8xf32> to vector<16x8xbf16>
    %176 = vector.extract_strided_slice %159 {offsets = [0, 0], sizes = [8, 8], strides = [1, 1]} : vector<8x32xf32> to vector<8x8xf32>
    %177 = arith.mulf %176, %176 : vector<8x8xf32>
    %cst_53 = arith.constant dense<0.000000e+00> : vector<8xf32>
    %178 = vector.multi_reduction <add>, %177, %cst_53 [1] : vector<8x8xf32> to vector<8xf32>
    %179 = vector.shape_cast %178 : vector<8xf32> to vector<8x1xf32>
    %cst_54 = arith.constant 8.000000e+00 : f32
    %180 = vector.broadcast %cst_54 : f32 to vector<8x1xf32>
    %181 = arith.divf %179, %180 : vector<8x1xf32>
    %cst_55 = arith.constant 9.99999974E-6 : f32
    %182 = vector.broadcast %cst_55 : f32 to vector<8x1xf32>
    %183 = arith.addf %181, %182 : vector<8x1xf32>
    %184 = math.rsqrt %183 : vector<8x1xf32>
    %185 = vector.broadcast %184 : vector<8x1xf32> to vector<8x8xf32>
    %186 = arith.mulf %176, %185 : vector<8x8xf32>
    %187 = vector.broadcast %10 : vector<1x8xf32> to vector<8x8xf32>
    %188 = arith.mulf %186, %187 : vector<8x8xf32>
    %189 = vector.extract_strided_slice %159 {offsets = [0, 8], sizes = [8, 8], strides = [1, 1]} : vector<8x32xf32> to vector<8x8xf32>
    %190 = arith.mulf %189, %189 : vector<8x8xf32>
    %cst_56 = arith.constant dense<0.000000e+00> : vector<8xf32>
    %191 = vector.multi_reduction <add>, %190, %cst_56 [1] : vector<8x8xf32> to vector<8xf32>
    %192 = vector.shape_cast %191 : vector<8xf32> to vector<8x1xf32>
    %cst_57 = arith.constant 8.000000e+00 : f32
    %193 = vector.broadcast %cst_57 : f32 to vector<8x1xf32>
    %194 = arith.divf %192, %193 : vector<8x1xf32>
    %cst_58 = arith.constant 9.99999974E-6 : f32
    %195 = vector.broadcast %cst_58 : f32 to vector<8x1xf32>
    %196 = arith.addf %194, %195 : vector<8x1xf32>
    %197 = math.rsqrt %196 : vector<8x1xf32>
    %198 = vector.broadcast %197 : vector<8x1xf32> to vector<8x8xf32>
    %199 = arith.mulf %189, %198 : vector<8x8xf32>
    %200 = vector.broadcast %10 : vector<1x8xf32> to vector<8x8xf32>
    %201 = arith.mulf %199, %200 : vector<8x8xf32>
    %202 = tpu.concatenate %188, %201 in 0 : vector<8x8xf32>, vector<8x8xf32> -> vector<16x8xf32>
    %203 = arith.truncf %202 : vector<16x8xf32> to vector<16x8xbf16>
    %204 = tpu.transpose %173, [1, 0] : vector<16x8xf32> -> vector<8x16xf32>
    %205 = arith.truncf %204 : vector<8x16xf32> to vector<8x16xbf16>
    %cst_59 = arith.constant dense<0.000000e+00> : vector<16x16xf32>
    %206 = tpu.matmul %203, %205, %cst_59 {dimension_numbers = #tpu.dot_dimension_numbers<[1], [0], [0], [1], [0, 0, 1, 1], [], []>} : vector<16x8xbf16>, vector<8x16xbf16>, vector<16x16xf32> -> vector<16x16xf32>
    %cst_60 = arith.constant 0.353553385 : f32
    %207 = vector.broadcast %cst_60 : f32 to vector<16x16xf32>
    %208 = arith.mulf %206, %207 : vector<16x16xf32>
    %cst_61 = arith.constant dense<0xFF800000> : vector<16xf32>
    %209 = vector.multi_reduction <maximumf>, %208, %cst_61 [1] : vector<16x16xf32> to vector<16xf32>
    %210 = vector.shape_cast %209 : vector<16xf32> to vector<16x1xf32>
    %211 = vector.broadcast %210 : vector<16x1xf32> to vector<16x16xf32>
    %212 = arith.subf %208, %211 : vector<16x16xf32>
    %213 = math.exp %212 : vector<16x16xf32>
    %cst_62 = arith.constant dense<0.000000e+00> : vector<16xf32>
    %214 = vector.multi_reduction <add>, %213, %cst_62 [1] : vector<16x16xf32> to vector<16xf32>
    %215 = vector.shape_cast %214 : vector<16xf32> to vector<16x1xf32>
    %216 = tpu.reciprocal %215 {approx = true} : vector<16x1xf32> -> vector<16x1xf32>
    %217 = vector.broadcast %216 : vector<16x1xf32> to vector<16x16xf32>
    %218 = arith.mulf %213, %217 : vector<16x16xf32>
    %219 = arith.truncf %218 : vector<16x16xf32> to vector<16x16xbf16>
    %cst_63 = arith.constant dense<0.000000e+00> : vector<16x8xf32>
    %220 = tpu.matmul %219, %175, %cst_63 {dimension_numbers = #tpu.dot_dimension_numbers<[1], [0], [0], [1], [0, 0, 1, 1], [], []>} : vector<16x16xbf16>, vector<16x8xbf16>, vector<16x8xf32> -> vector<16x8xf32>
    %221 = vector.extract_strided_slice %220 {offsets = [0, 0], sizes = [8, 8], strides = [1, 1]} : vector<16x8xf32> to vector<8x8xf32>
    %222 = vector.extract_strided_slice %220 {offsets = [8, 0], sizes = [8, 8], strides = [1, 1]} : vector<16x8xf32> to vector<8x8xf32>
    %223 = vector.extract_strided_slice %160 {offsets = [0, 8], sizes = [16, 8], strides = [1, 1]} : vector<16x32xf32> to vector<16x8xf32>
    %224 = arith.mulf %223, %223 : vector<16x8xf32>
    %cst_64 = arith.constant dense<0.000000e+00> : vector<16xf32>
    %225 = vector.multi_reduction <add>, %224, %cst_64 [1] : vector<16x8xf32> to vector<16xf32>
    %226 = vector.shape_cast %225 : vector<16xf32> to vector<16x1xf32>
    %cst_65 = arith.constant 8.000000e+00 : f32
    %227 = vector.broadcast %cst_65 : f32 to vector<16x1xf32>
    %228 = arith.divf %226, %227 : vector<16x1xf32>
    %cst_66 = arith.constant 9.99999974E-6 : f32
    %229 = vector.broadcast %cst_66 : f32 to vector<16x1xf32>
    %230 = arith.addf %228, %229 : vector<16x1xf32>
    %231 = math.rsqrt %230 : vector<16x1xf32>
    %232 = vector.broadcast %231 : vector<16x1xf32> to vector<16x8xf32>
    %233 = arith.mulf %223, %232 : vector<16x8xf32>
    %234 = vector.broadcast %11 : vector<1x8xf32> to vector<16x8xf32>
    %235 = arith.mulf %233, %234 : vector<16x8xf32>
    %236 = vector.extract_strided_slice %160 {offsets = [0, 24], sizes = [16, 8], strides = [1, 1]} : vector<16x32xf32> to vector<16x8xf32>
    %237 = arith.truncf %236 : vector<16x8xf32> to vector<16x8xbf16>
    %238 = vector.extract_strided_slice %159 {offsets = [0, 16], sizes = [8, 8], strides = [1, 1]} : vector<8x32xf32> to vector<8x8xf32>
    %239 = arith.mulf %238, %238 : vector<8x8xf32>
    %cst_67 = arith.constant dense<0.000000e+00> : vector<8xf32>
    %240 = vector.multi_reduction <add>, %239, %cst_67 [1] : vector<8x8xf32> to vector<8xf32>
    %241 = vector.shape_cast %240 : vector<8xf32> to vector<8x1xf32>
    %cst_68 = arith.constant 8.000000e+00 : f32
    %242 = vector.broadcast %cst_68 : f32 to vector<8x1xf32>
    %243 = arith.divf %241, %242 : vector<8x1xf32>
    %cst_69 = arith.constant 9.99999974E-6 : f32
    %244 = vector.broadcast %cst_69 : f32 to vector<8x1xf32>
    %245 = arith.addf %243, %244 : vector<8x1xf32>
    %246 = math.rsqrt %245 : vector<8x1xf32>
    %247 = vector.broadcast %246 : vector<8x1xf32> to vector<8x8xf32>
    %248 = arith.mulf %238, %247 : vector<8x8xf32>
    %249 = vector.broadcast %10 : vector<1x8xf32> to vector<8x8xf32>
    %250 = arith.mulf %248, %249 : vector<8x8xf32>
    %251 = vector.extract_strided_slice %159 {offsets = [0, 24], sizes = [8, 8], strides = [1, 1]} : vector<8x32xf32> to vector<8x8xf32>
    %252 = arith.mulf %251, %251 : vector<8x8xf32>
    %cst_70 = arith.constant dense<0.000000e+00> : vector<8xf32>
    %253 = vector.multi_reduction <add>, %252, %cst_70 [1] : vector<8x8xf32> to vector<8xf32>
    %254 = vector.shape_cast %253 : vector<8xf32> to vector<8x1xf32>
    %cst_71 = arith.constant 8.000000e+00 : f32
    %255 = vector.broadcast %cst_71 : f32 to vector<8x1xf32>
    %256 = arith.divf %254, %255 : vector<8x1xf32>
    %cst_72 = arith.constant 9.99999974E-6 : f32
    %257 = vector.broadcast %cst_72 : f32 to vector<8x1xf32>
    %258 = arith.addf %256, %257 : vector<8x1xf32>
    %259 = math.rsqrt %258 : vector<8x1xf32>
    %260 = vector.broadcast %259 : vector<8x1xf32> to vector<8x8xf32>
    %261 = arith.mulf %251, %260 : vector<8x8xf32>
    %262 = vector.broadcast %10 : vector<1x8xf32> to vector<8x8xf32>
    %263 = arith.mulf %261, %262 : vector<8x8xf32>
    %264 = tpu.concatenate %250, %263 in 0 : vector<8x8xf32>, vector<8x8xf32> -> vector<16x8xf32>
    %265 = arith.truncf %264 : vector<16x8xf32> to vector<16x8xbf16>
    %266 = tpu.transpose %235, [1, 0] : vector<16x8xf32> -> vector<8x16xf32>
    %267 = arith.truncf %266 : vector<8x16xf32> to vector<8x16xbf16>
    %cst_73 = arith.constant dense<0.000000e+00> : vector<16x16xf32>
    %268 = tpu.matmul %265, %267, %cst_73 {dimension_numbers = #tpu.dot_dimension_numbers<[1], [0], [0], [1], [0, 0, 1, 1], [], []>} : vector<16x8xbf16>, vector<8x16xbf16>, vector<16x16xf32> -> vector<16x16xf32>
    %cst_74 = arith.constant 0.353553385 : f32
    %269 = vector.broadcast %cst_74 : f32 to vector<16x16xf32>
    %270 = arith.mulf %268, %269 : vector<16x16xf32>
    %cst_75 = arith.constant dense<0xFF800000> : vector<16xf32>
    %271 = vector.multi_reduction <maximumf>, %270, %cst_75 [1] : vector<16x16xf32> to vector<16xf32>
    %272 = vector.shape_cast %271 : vector<16xf32> to vector<16x1xf32>
    %273 = vector.broadcast %272 : vector<16x1xf32> to vector<16x16xf32>
    %274 = arith.subf %270, %273 : vector<16x16xf32>
    %275 = math.exp %274 : vector<16x16xf32>
    %cst_76 = arith.constant dense<0.000000e+00> : vector<16xf32>
    %276 = vector.multi_reduction <add>, %275, %cst_76 [1] : vector<16x16xf32> to vector<16xf32>
    %277 = vector.shape_cast %276 : vector<16xf32> to vector<16x1xf32>
    %278 = tpu.reciprocal %277 {approx = true} : vector<16x1xf32> -> vector<16x1xf32>
    %279 = vector.broadcast %278 : vector<16x1xf32> to vector<16x16xf32>
    %280 = arith.mulf %275, %279 : vector<16x16xf32>
    %281 = arith.truncf %280 : vector<16x16xf32> to vector<16x16xbf16>
    %cst_77 = arith.constant dense<0.000000e+00> : vector<16x8xf32>
    %282 = tpu.matmul %281, %237, %cst_77 {dimension_numbers = #tpu.dot_dimension_numbers<[1], [0], [0], [1], [0, 0, 1, 1], [], []>} : vector<16x16xbf16>, vector<16x8xbf16>, vector<16x8xf32> -> vector<16x8xf32>
    %283 = vector.extract_strided_slice %282 {offsets = [0, 0], sizes = [8, 8], strides = [1, 1]} : vector<16x8xf32> to vector<8x8xf32>
    %284 = vector.extract_strided_slice %282 {offsets = [8, 0], sizes = [8, 8], strides = [1, 1]} : vector<16x8xf32> to vector<8x8xf32>
    %285 = tpu.concatenate %221, %222, %283, %284 in 1 : vector<8x8xf32>, vector<8x8xf32>, vector<8x8xf32>, vector<8x8xf32> -> vector<8x32xf32>
    %286 = tpu.concatenate %158, %285 in 0 : vector<8x32xf32>, vector<8x32xf32> -> vector<16x32xf32>
    %287 = arith.truncf %286 : vector<16x32xf32> to vector<16x32xbf16>
    %c0_78 = arith.constant 0 : index
    %c0_79 = arith.constant 0 : index
    %288 = vector.load %arg7[%c0_78, %c0_79] : memref<32x32xbf16, #tpu.memory_space<vmem>>, vector<32x32xbf16>
    %cst_80 = arith.constant dense<0.000000e+00> : vector<16x32xf32>
    %289 = tpu.matmul %287, %288, %cst_80 {dimension_numbers = #tpu.dot_dimension_numbers<[1], [0], [0], [1], [0, 0, 1, 1], [], []>} : vector<16x32xbf16>, vector<32x32xbf16>, vector<16x32xf32> -> vector<16x32xf32>
    %290 = vector.broadcast %6 : vector<16x1xf32> to vector<16x32xf32>
    %291 = arith.mulf %290, %289 : vector<16x32xf32>
    %292 = arith.addf %13, %291 : vector<16x32xf32>
    %cst_81 = arith.constant 1.000000e+00 : f32
    %293 = vector.broadcast %cst_81 : f32 to vector<16x32xf32>
    %294 = arith.mulf %292, %293 : vector<16x32xf32>
    %295 = arith.mulf %292, %292 : vector<16x32xf32>
    %cst_82 = arith.constant dense<0.000000e+00> : vector<16xf32>
    %296 = vector.multi_reduction <add>, %295, %cst_82 [1] : vector<16x32xf32> to vector<16xf32>
    %297 = vector.shape_cast %296 : vector<16xf32> to vector<16x1xf32>
    %cst_83 = arith.constant 3.200000e+01 : f32
    %298 = vector.broadcast %cst_83 : f32 to vector<16x1xf32>
    %299 = arith.divf %297, %298 : vector<16x1xf32>
    %cst_84 = arith.constant 9.99999974E-6 : f32
    %300 = vector.broadcast %cst_84 : f32 to vector<16x1xf32>
    %301 = arith.addf %299, %300 : vector<16x1xf32>
    %302 = math.rsqrt %301 : vector<16x1xf32>
    %303 = vector.broadcast %302 : vector<16x1xf32> to vector<16x32xf32>
    %304 = arith.mulf %292, %303 : vector<16x32xf32>
    %305 = vector.broadcast %9 : vector<1x32xf32> to vector<16x32xf32>
    %306 = arith.mulf %304, %305 : vector<16x32xf32>
    %307 = arith.truncf %306 : vector<16x32xf32> to vector<16x32xbf16>
    %c0_85 = arith.constant 0 : index
    %c0_86 = arith.constant 0 : index
    %308 = vector.load %arg8[%c0_85, %c0_86] : memref<32x128xbf16, #tpu.memory_space<vmem>>, vector<32x128xbf16>
    %cst_87 = arith.constant dense<0.000000e+00> : vector<16x128xf32>
    %309 = tpu.matmul %307, %308, %cst_87 {dimension_numbers = #tpu.dot_dimension_numbers<[1], [0], [0], [1], [0, 0, 1, 1], [], []>} : vector<16x32xbf16>, vector<32x128xbf16>, vector<16x128xf32> -> vector<16x128xf32>
    %310 = vector.extract_strided_slice %309 {offsets = [0, 0], sizes = [16, 64], strides = [1, 1]} : vector<16x128xf32> to vector<16x64xf32>
    %311 = vector.extract_strided_slice %309 {offsets = [0, 64], sizes = [16, 64], strides = [1, 1]} : vector<16x128xf32> to vector<16x64xf32>
    %312 = arith.negf %310 : vector<16x64xf32>
    %313 = math.exp %312 : vector<16x64xf32>
    %cst_88 = arith.constant 1.000000e+00 : f32
    %314 = vector.broadcast %cst_88 : f32 to vector<16x64xf32>
    %315 = arith.addf %314, %313 : vector<16x64xf32>
    %316 = arith.divf %314, %315 : vector<16x64xf32>
    %317 = arith.mulf %310, %316 : vector<16x64xf32>
    %318 = arith.mulf %317, %311 : vector<16x64xf32>
    %319 = arith.truncf %318 : vector<16x64xf32> to vector<16x64xbf16>
    %c0_89 = arith.constant 0 : index
    %c0_90 = arith.constant 0 : index
    %320 = vector.load %arg9[%c0_89, %c0_90] : memref<64x32xbf16, #tpu.memory_space<vmem>>, vector<64x32xbf16>
    %cst_91 = arith.constant dense<0.000000e+00> : vector<16x32xf32>
    %321 = tpu.matmul %319, %320, %cst_91 {dimension_numbers = #tpu.dot_dimension_numbers<[1], [0], [0], [1], [0, 0, 1, 1], [], []>} : vector<16x64xbf16>, vector<64x32xbf16>, vector<16x32xf32> -> vector<16x32xf32>
    %322 = vector.broadcast %7 : vector<16x1xf32> to vector<16x32xf32>
    %323 = arith.mulf %322, %321 : vector<16x32xf32>
    %324 = arith.addf %294, %323 : vector<16x32xf32>
    %325 = vector.shape_cast %324 : vector<16x32xf32> to vector<2x8x32xf32>
    %c0_92 = arith.constant 0 : index
    %c0_93 = arith.constant 0 : index
    %c0_94 = arith.constant 0 : index
    %326 = vector.load %arg10[%c0_92, %c0_93, %c0_94] : memref<2x8x32xf32, #tpu.memory_space<vmem>>, vector<2x8x32xf32>
    tpu.vector_store %arg10[%c0_92, %c0_93, %c0_94], %325 {strides = array<i32>} : memref<2x8x32xf32, #tpu.memory_space<vmem>>, vector<2x8x32xf32>,
    return
  }
  func.func @transform_0(%arg0: i32) -> (i32, i32, i32) {
    %c0_i32 = arith.constant 0 : i32
    %c0_i32_0 = arith.constant 0 : i32
    %c0_i32_1 = arith.constant 0 : i32
    return %arg0, %c0_i32, %c0_i32_0 : i32, i32, i32
  }
  func.func @transform_1(%arg0: i32) -> (i32, i32, i32) {
    %c0_i32 = arith.constant 0 : i32
    %c0_i32_0 = arith.constant 0 : i32
    %c0_i32_1 = arith.constant 0 : i32
    return %arg0, %c0_i32, %c0_i32_0 : i32, i32, i32
  }
  func.func @transform_2(%arg0: i32) -> (i32, i32, i32) {
    %c0_i32 = arith.constant 0 : i32
    %c0_i32_0 = arith.constant 0 : i32
    %c0_i32_1 = arith.constant 0 : i32
    return %arg0, %c0_i32, %c0_i32_0 : i32, i32, i32
  }
  func.func @transform_3(%arg0: i32) -> (i32, i32) {
    %c0_i32 = arith.constant 0 : i32
    %c0_i32_0 = arith.constant 0 : i32
    %c0_i32_1 = arith.constant 0 : i32
    return %c0_i32, %c0_i32_0 : i32, i32
  }
  func.func @transform_4(%arg0: i32) -> (i32, i32) {
    %c0_i32 = arith.constant 0 : i32
    %c0_i32_0 = arith.constant 0 : i32
    %c0_i32_1 = arith.constant 0 : i32
    return %c0_i32, %c0_i32_0 : i32, i32
  }
  func.func @transform_5(%arg0: i32) -> (i32, i32) {
    %c0_i32 = arith.constant 0 : i32
    %c0_i32_0 = arith.constant 0 : i32
    %c0_i32_1 = arith.constant 0 : i32
    return %c0_i32, %c0_i32_0 : i32, i32
  }
  func.func @transform_6(%arg0: i32) -> (i32, i32) {
    %c0_i32 = arith.constant 0 : i32
    %c0_i32_0 = arith.constant 0 : i32
    %c0_i32_1 = arith.constant 0 : i32
    return %c0_i32, %c0_i32_0 : i32, i32
  }
  func.func @transform_7(%arg0: i32) -> (i32, i32) {
    %c0_i32 = arith.constant 0 : i32
    %c0_i32_0 = arith.constant 0 : i32
    %c0_i32_1 = arith.constant 0 : i32
    return %c0_i32, %c0_i32_0 : i32, i32
  }
  func.func @transform_8(%arg0: i32) -> (i32, i32) {
    %c0_i32 = arith.constant 0 : i32
    %c0_i32_0 = arith.constant 0 : i32
    %c0_i32_1 = arith.constant 0 : i32
    return %c0_i32, %c0_i32_0 : i32, i32
  }
  func.func @transform_9(%arg0: i32) -> (i32, i32, i32) {
    %c0_i32 = arith.constant 0 : i32
    %c0_i32_0 = arith.constant 0 : i32
    %c0_i32_1 = arith.constant 0 : i32
    return %arg0, %c0_i32, %c0_i32_0 : i32, i32, i32
  }
}

</mosaic_0001>

<llo_original>
// kernel: tpu_custom_call.1
$region0: #{tpu_custom_call.1}
  #allocation0 [shape = 'u32[]', space=smem, size = 0x4, offset = 0x4, fixed_abs, tag = 'smem constant byte address 0x4 - core index']
  #allocation1 [shape = 'u32[144,128]{1,0:T(1,128)}', space=vmem, size = 0x12000, scoped, tag = 'internal scratch']
  %s0 = inlined_call_operand.vmem [shape: f32[2,8,32], index: 0, kind: input, shape index: {}]
  %s1 = inlined_call_operand.vmem [shape: f32[2,16,32], index: 1, kind: input, shape index: {}]
  %s2 = inlined_call_operand.vmem [shape: f32[2,8,2], index: 2, kind: input, shape index: {}]
  %s3 = inlined_call_operand.hbm [shape: f32[4,32], index: 3, kind: input, shape index: {}]
  %s4 = inlined_call_operand.vmem [shape: bf16[32,32], index: 4, kind: input, shape index: {}]
  %s5 = inlined_call_operand.hbm [shape: bf16[32,32], index: 5, kind: input, shape index: {}]
  %s6 = inlined_call_operand.hbm [shape: bf16[32,32], index: 6, kind: input, shape index: {}]
  %s7 = inlined_call_operand.hbm [shape: bf16[32,128], index: 7, kind: input, shape index: {}]
  %s8 = inlined_call_operand.vmem [shape: bf16[64,32], index: 8, kind: input, shape index: {}]
  %s9 = inlined_call_operand.hbm [shape: f32[2,8,32], index: 9, kind: output, shape index: {}]
  %s10 = sld [smem:[#allocation0]]
  $region62: #{tpu_custom_call.1} parent=0
    _
  %s12 = ssub.s32 1, %s10
  %s13 = scalar_select 0, %s12, %s10
  $region1: #{tpu_custom_call.1} parent=0
    #allocation2 [shape = 'u8[2048]{0}', space=vmem, size = 0x800, scoped, tag = 'input window, operand 3, single buffered']
    #allocation3 [shape = 's32[1]{0}', space=sflag, size = 0x4, scoped, tag = 'scoped memory for tpu_custom_call.1']
    #allocation4 [shape = 's32[1]{0}', space=sflag, size = 0x4, scoped, tag = 'scoped memory for tpu_custom_call.1']
    #allocation5 [shape = 'u8[8192]{0}', space=vmem, size = 0x2000, scoped, tag = 'input window, operand 5, single buffered']
    #allocation6 [shape = 's32[1]{0}', space=sflag, size = 0x4, scoped, tag = 'scoped memory for tpu_custom_call.1']
    #allocation7 [shape = 'u8[8192]{0}', space=vmem, size = 0x2000, scoped, tag = 'input window, operand 6, single buffered']
    #allocation8 [shape = 'u8[8192]{0}', space=vmem, size = 0x2000, scoped, tag = 'input window, operand 7, single buffered']
    #allocation9 [shape = 's32[1]{0}', space=sflag, size = 0x4, scoped, tag = 'scoped memory for tpu_custom_call.1']
    #allocation10 [shape = 'u8[8192]{0}', space=vmem, size = 0x2000, scoped, tag = 'output window, operand 0, single buffered']
    %14 = vsyncpa [#allocation3], 0
    %15 = vsyncpa [#allocation6], 0
    %16 = vsyncpa [#allocation9], 0
    %17 = vsyncpa [#allocation4], 0
    // Predicated region
    $region2: #{tpu_custom_call.1} parent=1 // pred_check
      _
    $region3: #{tpu_custom_call.1} parent=1 // pred_check_branch
      %19 = sbr.rel (0) target = $region5
    $region4: #{tpu_custom_call.1} parent=1 // pred_region
      _
    $region5: #{tpu_custom_call.1} parent=1 // pred_fallthru
      _
    // Predicated region
    $region6: #{tpu_custom_call.1} parent=1 // pred_check
      _
    $region7: #{tpu_custom_call.1} parent=1 // pred_check_branch
      %21 = sbr.rel (0) target = $region9
    $region8: #{tpu_custom_call.1} parent=1 // pred_region
      _
    $region9: #{tpu_custom_call.1} parent=1 // pred_fallthru
      _
    // Predicated region
    $region10: #{tpu_custom_call.1} parent=1 // pred_check
      _
    $region11: #{tpu_custom_call.1} parent=1 // pred_check_branch
      %23 = sbr.rel (0) target = $region13
    $region12: #{tpu_custom_call.1} parent=1 // pred_region
      _
    $region13: #{tpu_custom_call.1} parent=1 // pred_fallthru
      _
    // Predicated region
    $region14: #{tpu_custom_call.1} parent=1 // pred_check
      _
    $region15: #{tpu_custom_call.1} parent=1 // pred_check_branch
      %25 = sbr.rel (0) target = $region17
    $region16: #{tpu_custom_call.1} parent=1 // pred_region
      %s27 = ssub.s32 64, 64
      %28 = vsyncadd [#allocation3], %s27
      %s30 = sshll.u32 [#allocation2], 4
      %s31 = int_to_ptr.vmem [resolvable:$true] %s30
      %33 = dma.hbm_to_vmem [thread:$0]  %s3, 64, %s31, [#allocation3]
    $region17: #{tpu_custom_call.1} parent=1 // pred_fallthru
      _
    // Predicated region
    $region18: #{tpu_custom_call.1} parent=1 // pred_check
      _
    $region19: #{tpu_custom_call.1} parent=1 // pred_check_branch
      %35 = sbr.rel (0) target = $region21
    $region20: #{tpu_custom_call.1} parent=1 // pred_region
      _
    $region21: #{tpu_custom_call.1} parent=1 // pred_fallthru
      _
    // Predicated region
    $region22: #{tpu_custom_call.1} parent=1 // pred_check
      _
    $region23: #{tpu_custom_call.1} parent=1 // pred_check_branch
      %37 = sbr.rel (0) target = $region25
    $region24: #{tpu_custom_call.1} parent=1 // pred_region
      %s39 = ssub.s32 256, 256
      %40 = vsyncadd [#allocation6], %s39
      %s41 = sshll.u32 [#allocation5], 4
      %s42 = int_to_ptr.vmem [resolvable:$true] %s41
      %47 = dma.hbm_to_vmem [thread:$0]  %s5, 256, %s42, [#allocation6], 64, 64, 4
    $region25: #{tpu_custom_call.1} parent=1 // pred_fallthru
      _
    // Predicated region
    $region26: #{tpu_custom_call.1} parent=1 // pred_check
      _
    $region27: #{tpu_custom_call.1} parent=1 // pred_check_branch
      %49 = sbr.rel (0) target = $region29
    $region28: #{tpu_custom_call.1} parent=1 // pred_region
      %s51 = ssub.s32 256, 256
      %52 = vsyncadd [#allocation6], %s51
      %s53 = sshll.u32 [#allocation7], 4
      %s54 = int_to_ptr.vmem [resolvable:$true] %s53
      %59 = dma.hbm_to_vmem [thread:$0]  %s6, 256, %s54, [#allocation6], 64, 64, 4
    $region29: #{tpu_custom_call.1} parent=1 // pred_fallthru
      _
    // Predicated region
    $region30: #{tpu_custom_call.1} parent=1 // pred_check
      _
    $region31: #{tpu_custom_call.1} parent=1 // pred_check_branch
      %61 = sbr.rel (0) target = $region33
    $region32: #{tpu_custom_call.1} parent=1 // pred_region
      %s63 = ssub.s32 256, 256
      %64 = vsyncadd [#allocation9], %s63
      %s65 = sshll.u32 [#allocation8], 4
      %s66 = int_to_ptr.vmem [resolvable:$true] %s65
      %71 = dma.hbm_to_vmem [thread:$0]  %s7, 256, %s66, [#allocation9], 64, 64, 4
    $region33: #{tpu_custom_call.1} parent=1 // pred_fallthru
      _
    // Predicated region
    $region34: #{tpu_custom_call.1} parent=1 // pred_check
      _
    $region35: #{tpu_custom_call.1} parent=1 // pred_check_branch
      %73 = sbr.rel (0) target = $region37
    $region36: #{tpu_custom_call.1} parent=1 // pred_region
      _
    $region37: #{tpu_custom_call.1} parent=1 // pred_fallthru
      _
    // Predicated region
    $region38: #{tpu_custom_call.1} parent=1 // pred_check
      _
    $region39: #{tpu_custom_call.1} parent=1 // pred_check_branch
      %75 = sbr.rel (0) target = $region41
    $region40: #{tpu_custom_call.1} parent=1 // pred_region
      %76 = dma.done [#allocation3], 64
    $region41: #{tpu_custom_call.1} parent=1 // pred_fallthru
      _
    // Predicated region
    $region42: #{tpu_custom_call.1} parent=1 // pred_check
      _
    $region43: #{tpu_custom_call.1} parent=1 // pred_check_branch
      %78 = sbr.rel (0) target = $region45
    $region44: #{tpu_custom_call.1} parent=1 // pred_region
      %79 = dma.done [#allocation6], 256
    $region45: #{tpu_custom_call.1} parent=1 // pred_fallthru
      _
    // Predicated region
    $region46: #{tpu_custom_call.1} parent=1 // pred_check
      _
    $region47: #{tpu_custom_call.1} parent=1 // pred_check_branch
      %81 = sbr.rel (0) target = $region49
    $region48: #{tpu_custom_call.1} parent=1 // pred_region
      %82 = dma.done [#allocation6], 256
    $region49: #{tpu_custom_call.1} parent=1 // pred_fallthru
      _
    // Predicated region
    $region50: #{tpu_custom_call.1} parent=1 // pred_check
      _
    $region51: #{tpu_custom_call.1} parent=1 // pred_check_branch
      %84 = sbr.rel (0) target = $region53
    $region52: #{tpu_custom_call.1} parent=1 // pred_region
      %85 = dma.done [#allocation9], 256
    $region53: #{tpu_custom_call.1} parent=1 // pred_fallthru
      _
    %v87 = vld [vmem:[%s0] sm:$0xff]
    %v88 = vld [vmem:[%s0 + $0x8] sm:$0xff]
    %v89 = vld [vmem:[%s1] sm:$0xff]
    %v90 = vld [vmem:[%s1 + $0x8] sm:$0xff]
    %v91 = vld [vmem:[%s1 + $0x10] sm:$0xff]
    %v92 = vld [vmem:[%s1 + $0x18] sm:$0xff]
    %v93 = vld [vmem:[%s2] sm:$0xff]
    %v94 = vld [vmem:[%s2 + $0x8] sm:$0xff]
    %v95 = vld [vmem:[#allocation2] sm:$0x1]
    %v96 = vld [vmem:[#allocation2 + $0x1] sm:$0x1]
    %v97 = vld [vmem:[#allocation2 + $0x2] sm:$0x1]
    %v98 = vld [vmem:[#allocation2 + $0x3] sm:$0x1]
    %v99 = vmul.f32 %v87, %v87
    %v100 = vmul.f32 %v88, %v88
    %vm101 = vcmask 261120
    %v102 = vsel %vm101, %v99, 0.0
    %103 = vadd.xlane.f32.xlu0 %v102
    %v104 = vpop.xlane.xlu0 %103
    %v105 = vsel %vm101, %v100, 0.0
    %106 = vadd.xlane.f32.xlu0 %v105
    %v107 = vpop.xlane.xlu0 %106
    %v108 = vrcp.pop 32.0
    %v109 = vmul.f32 %v104, %v108
    %v110 = vmul.f32 %v107, %v108
    %v111 = vadd.f32 %v109, 1e-05
    %v112 = vadd.f32 %v110, 1e-05
    %v113 = vrsqrt.pop %v111
    %v114 = vrsqrt.pop %v112
    %v115 = vmul.f32 %v87, %v113
    %v116 = vmul.f32 %v88, %v114
    %v117 = vlaneseq
    %v118 = vshrl.u32 %v117, 7
    %v119 = vsub.s32 0, %v118
    %v120 = vrot.slane %v95, %v119
    %v121 = vmul.f32 %v115, %v120
    %v122 = vmul.f32 %v116, %v120
    %v123 = vpack.c.bf16 %v122, %v121
    %v124 = vld [vmem:[%s4] sm:$0xf]
    %v125 = vld [vmem:[%s4 + $0x4] sm:$0xf]
    %v126 = vld [vmem:[%s4 + $0x8] sm:$0xf]
    %v127 = vld [vmem:[%s4 + $0xc] sm:$0xf]
    %v132 = vunpack.c.l.b16 %v124
    %v133 = vunpack.c.l.b16 %v125
    %v134 = vunpack.c.l.b16 %v126
    %v135 = vunpack.c.l.b16 %v127
    %v136 = vpack.c.b16 %v133, %v132
    %v137 = vpack.c.b16 %v135, %v134
    %v141 = vsel %vm101, %v123, 0
    %143 = vmatprep.subr.bf16.mxu0 0
    %144 = vmatpush1.bf16.msra.mxu0 %v136
    %145 = vmatprep.subr.bf16.mxu0 0
    %146 = vmatpush1.bf16.msra.mxu0 %v137
    %147 = vmatprep.subr.bf16.mxu0 0
    %148 = vmatpush1.bf16.msra.mxu0 0
    %149 = vmatprep.subr.bf16.mxu0 0
    %150 = vmatpush1.bf16.msra.mxu0 0
    %151 = vmatprep.subr.bf16.mxu0 0
    %152 = vmatpush1.bf16.msra.mxu0 0
    %153 = vmatprep.subr.bf16.mxu0 0
    %154 = vmatpush1.bf16.msra.mxu0 0
    %155 = vmatprep.subr.bf16.mxu0 0
    %156 = vmatpush1.bf16.msra.mxu0 0
    %157 = vmatprep.subr.bf16.mxu0 0
    %158 = vmatpush1.bf16.msra.mxu0 0
    %159 = vmatprep.subr.bf16.mxu0 0
    %160 = vmatpush1.bf16.msra.mxu0 0
    %161 = vmatprep.subr.bf16.mxu0 0
    %162 = vmatpush1.bf16.msra.mxu0 0
    %163 = vmatprep.subr.bf16.mxu0 0
    %164 = vmatpush1.bf16.msra.mxu0 0
    %165 = vmatprep.subr.bf16.mxu0 0
    %166 = vmatpush1.bf16.msra.mxu0 0
    %167 = vmatprep.subr.bf16.mxu0 0
    %168 = vmatpush1.bf16.msra.mxu0 0
    %169 = vmatprep.subr.bf16.mxu0 0
    %170 = vmatpush1.bf16.msra.mxu0 0
    %171 = vmatprep.subr.bf16.mxu0 0
    %172 = vmatpush1.bf16.msra.mxu0 0
    %173 = vmatprep.subr.bf16.mxu0 0
    %174 = vmatpush1.bf16.msra.mxu0 0
    %175 = vmatprep.mubr.bf16.mxu0 0
    %176 = vmatmul.mubr.bf16.gmra.mrb[0].mxu0 %v141
    %v177 = vpop.f32.mrb[0].mxu0
    %v178 = vadd.f32 0.0, %v177
    %v179 = vpop.f32.mrb[0].mxu0
    %v180 = vpop.f32.mrb[0].mxu0
    %v181 = vadd.f32 0.0, %v180
    %v182 = vpop.f32.mrb[0].mxu0
    %183 = vdwg.mxu0
    %v184 = vpack.c.bf16 %v90, %v89
    %v185 = vpack.c.bf16 %v92, %v91
    %v186 = vld [vmem:[#allocation5] sm:$0xf]
    %v187 = vld [vmem:[#allocation5 + $0x4] sm:$0xf]
    %v188 = vld [vmem:[#allocation5 + $0x8] sm:$0xf]
    %v189 = vld [vmem:[#allocation5 + $0xc] sm:$0xf]
    %v194 = vunpack.c.l.b16 %v186
    %v195 = vunpack.c.l.b16 %v187
    %v196 = vunpack.c.l.b16 %v188
    %v197 = vunpack.c.l.b16 %v189
    %v198 = vpack.c.b16 %v195, %v194
    %v199 = vpack.c.b16 %v197, %v196
    %v203 = vsel %vm101, %v184, 0
    %v206 = vsel %vm101, %v185, 0
    %208 = vmatprep.subr.bf16.mxu0 0
    %209 = vmatpush1.bf16.msra.mxu0 %v198
    %210 = vmatprep.subr.bf16.mxu0 0
    %211 = vmatpush1.bf16.msra.mxu0 %v199
    %212 = vmatprep.subr.bf16.mxu0 0
    %213 = vmatpush1.bf16.msra.mxu0 0
    %214 = vmatprep.subr.bf16.mxu0 0
    %215 = vmatpush1.bf16.msra.mxu0 0
    %216 = vmatprep.subr.bf16.mxu0 0
    %217 = vmatpush1.bf16.msra.mxu0 0
    %218 = vmatprep.subr.bf16.mxu0 0
    %219 = vmatpush1.bf16.msra.mxu0 0
    %220 = vmatprep.subr.bf16.mxu0 0
    %221 = vmatpush1.bf16.msra.mxu0 0
    %222 = vmatprep.subr.bf16.mxu0 0
    %223 = vmatpush1.bf16.msra.mxu0 0
    %224 = vmatprep.subr.bf16.mxu0 0
    %225 = vmatpush1.bf16.msra.mxu0 0
    %226 = vmatprep.subr.bf16.mxu0 0
    %227 = vmatpush1.bf16.msra.mxu0 0
    %228 = vmatprep.subr.bf16.mxu0 0
    %229 = vmatpush1.bf16.msra.mxu0 0
    %230 = vmatprep.subr.bf16.mxu0 0
    %231 = vmatpush1.bf16.msra.mxu0 0
    %232 = vmatprep.subr.bf16.mxu0 0
    %233 = vmatpush1.bf16.msra.mxu0 0
    %234 = vmatprep.subr.bf16.mxu0 0
    %235 = vmatpush1.bf16.msra.mxu0 0
    %236 = vmatprep.subr.bf16.mxu0 0
    %237 = vmatpush1.bf16.msra.mxu0 0
    %238 = vmatprep.subr.bf16.mxu0 0
    %239 = vmatpush1.bf16.msra.mxu0 0
    %240 = vmatprep.mubr.bf16.mxu0 0
    %241 = vmatmul.mubr.bf16.gmra.mrb[0].mxu0 %v203
    %v242 = vpop.f32.mrb[0].mxu0
    %v243 = vadd.f32 0.0, %v242
    %v244 = vpop.f32.mrb[0].mxu0
    %v245 = vpop.f32.mrb[0].mxu0
    %v246 = vadd.f32 0.0, %v245
    %v247 = vpop.f32.mrb[0].mxu0
    %248 = vmatprep.mubr.bf16.mxu0 0
    %249 = vmatmul.mubr.bf16.gmra.mrb[0].mxu0 %v206
    %v250 = vpop.f32.mrb[0].mxu0
    %v251 = vadd.f32 0.0, %v250
    %v252 = vpop.f32.mrb[0].mxu0
    %v253 = vpop.f32.mrb[0].mxu0
    %v254 = vadd.f32 0.0, %v253
    %v255 = vpop.f32.mrb[0].mxu0
    %256 = vdwg.mxu0
    %v257 = vmul.f32 %v243, %v243
    %v258 = vmul.f32 %v246, %v246
    %vm259 = vcmask 64512
    %v260 = vsel %vm259, %v257, 0.0
    %261 = vadd.xlane.f32.xlu0 %v260
    %v262 = vpop.xlane.xlu0 %261
    %v263 = vsel %vm259, %v258, 0.0
    %264 = vadd.xlane.f32.xlu0 %v263
    %v265 = vpop.xlane.xlu0 %264
    %v266 = vrcp.pop 8.0
    %v267 = vmul.f32 %v262, %v266
    %v268 = vmul.f32 %v265, %v266
    %v269 = vadd.f32 %v267, 1e-05
    %v270 = vadd.f32 %v268, 1e-05
    %v271 = vrsqrt.pop %v269
    %v272 = vrsqrt.pop %v270
    %v273 = vmul.f32 %v243, %v271
    %v274 = vmul.f32 %v246, %v272
    %v275 = vlaneseq
    %v276 = vshrl.u32 %v275, 7
    %v277 = vsub.s32 0, %v276
    %v278 = vrot.slane %v98, %v277
    %v279 = vmul.f32 %v273, %v278
    %v280 = vmul.f32 %v274, %v278
    %v281 = vpack.c.bf16 %v246, %v243
    %v282 = vmul.f32 %v178, %v178
    %v283 = vsel %vm259, %v282, 0.0
    %284 = vadd.xlane.f32.xlu0 %v283
    %v285 = vpop.xlane.xlu0 %284
    %v286 = vmul.f32 %v285, %v266
    %v287 = vadd.f32 %v286, 1e-05
    %v288 = vrsqrt.pop %v287
    %v289 = vmul.f32 %v178, %v288
    %v290 = vlaneseq
    %v291 = vshrl.u32 %v290, 7
    %v292 = vsub.s32 0, %v291
    %v293 = vrot.slane %v97, %v292
    %v294 = vmul.f32 %v289, %v293
    %296 = vrot.lane.b32.xlu0 %v282, 120
    %v297 = vpop.permute.xlu0 %296
    %v299 = vsel %vm259, %v297, 0.0
    %300 = vadd.xlane.f32.xlu0 %v299
    %v301 = vpop.xlane.xlu0 %300
    %v302 = vmul.f32 %v301, %v266
    %v303 = vadd.f32 %v302, 1e-05
    %v304 = vrsqrt.pop %v303
    %v305 = vmul.f32 %v178, %v304
    %307 = vrot.lane.b32.xlu0 %v293, 8
    %v308 = vpop.permute.xlu0 %307
    %v310 = vmul.f32 %v305, %v308
    %312 = vrot.lane.b32.xlu0 %v310, 120
    %v313 = vpop.permute.xlu0 %312
    %v315 = vpack.c.bf16 %v313, %v294
    %316 = vxpose.xlu0.b32.start [1/16] %v279, 128
    %317 = vxpose.xlu0.b32.cont [2/16] %v280, 128
    %318 = vxpose.xlu0.b32.cont [3/16] 0.0, 128
    %319 = vxpose.xlu0.b32.cont [4/16] 0.0, 128
    %320 = vxpose.xlu0.b32.cont [5/16] 0.0, 128
    %321 = vxpose.xlu0.b32.cont [6/16] 0.0, 128
    %322 = vxpose.xlu0.b32.cont [7/16] 0.0, 128
    %323 = vxpose.xlu0.b32.cont [8/16] 0.0, 128
    %324 = vxpose.xlu0.b32.cont [9/16] 0.0, 128
    %325 = vxpose.xlu0.b32.cont [10/16] 0.0, 128
    %326 = vxpose.xlu0.b32.cont [11/16] 0.0, 128
    %327 = vxpose.xlu0.b32.cont [12/16] 0.0, 128
    %328 = vxpose.xlu0.b32.cont [13/16] 0.0, 128
    %329 = vxpose.xlu0.b32.cont [14/16] 0.0, 128
    %330 = vxpose.xlu0.b32.cont [15/16] 0.0, 128
    %331 = vxpose.xlu0.b32.end [16/16] 0.0, 128
    %v332 = vpop.trf.xlu0
    %v333 = vpop.trf.xlu0
    %v334 = vpop.trf.xlu0
    %v335 = vpop.trf.xlu0
    %v336 = vpop.trf.xlu0
    %v337 = vpop.trf.xlu0
    %v338 = vpop.trf.xlu0
    %v339 = vpop.trf.xlu0
    %v340 = vpop.trf.xlu0
    %v341 = vpop.trf.xlu0
    %v342 = vpop.trf.xlu0
    %v343 = vpop.trf.xlu0
    %v344 = vpop.trf.xlu0
    %v345 = vpop.trf.xlu0
    %v346 = vpop.trf.xlu0
    %v347 = vpop.trf.xlu0
    %v348 = vpack.c.bf16 %v332, %v332
    %v350 = vsel %vm259, %v315, 0
    %vm352 = vcmask 1043456
    %v354 = vsel %vm352, %v348, 0
    %356 = vmatprep.subr.bf16.mxu0 0
    %357 = vmatpush1.bf16.msra.mxu0 %v354
    %358 = vmatprep.subr.bf16.mxu0 0
    %359 = vmatpush1.bf16.msra.mxu0 0
    %360 = vmatprep.subr.bf16.mxu0 0
    %361 = vmatpush1.bf16.msra.mxu0 0
    %362 = vmatprep.subr.bf16.mxu0 0
    %363 = vmatpush1.bf16.msra.mxu0 0
    %364 = vmatprep.subr.bf16.mxu0 0
    %365 = vmatpush1.bf16.msra.mxu0 0
    %366 = vmatprep.subr.bf16.mxu0 0
    %367 = vmatpush1.bf16.msra.mxu0 0
    %368 = vmatprep.subr.bf16.mxu0 0
    %369 = vmatpush1.bf16.msra.mxu0 0
    %370 = vmatprep.subr.bf16.mxu0 0
    %371 = vmatpush1.bf16.msra.mxu0 0
    %372 = vmatprep.subr.bf16.mxu0 0
    %373 = vmatpush1.bf16.msra.mxu0 0
    %374 = vmatprep.subr.bf16.mxu0 0
    %375 = vmatpush1.bf16.msra.mxu0 0
    %376 = vmatprep.subr.bf16.mxu0 0
    %377 = vmatpush1.bf16.msra.mxu0 0
    %378 = vmatprep.subr.bf16.mxu0 0
    %379 = vmatpush1.bf16.msra.mxu0 0
    %380 = vmatprep.subr.bf16.mxu0 0
    %381 = vmatpush1.bf16.msra.mxu0 0
    %382 = vmatprep.subr.bf16.mxu0 0
    %383 = vmatpush1.bf16.msra.mxu0 0
    %384 = vmatprep.subr.bf16.mxu0 0
    %385 = vmatpush1.bf16.msra.mxu0 0
    %386 = vmatprep.subr.bf16.mxu0 0
    %387 = vmatpush1.bf16.msra.mxu0 0
    %388 = vmatprep.mubr.bf16.mxu0 0
    %389 = vmatmul.mubr.bf16.gmra.mrb[0].mxu0 %v350
    %v390 = vpop.f32.mrb[0].mxu0
    %v391 = vadd.f32 0.0, %v390
    %v392 = vpop.f32.mrb[0].mxu0
    %v393 = vpop.f32.mrb[0].mxu0
    %v394 = vadd.f32 0.0, %v393
    %v395 = vpop.f32.mrb[0].mxu0
    %396 = vdwg.mxu0
    %v397 = vmul.f32 %v391, 0.35355338
    %v398 = vmul.f32 %v394, 0.35355338
    %vm399 = vcmask 130048
    %v400 = vsel %vm399, %v397, -inf
    %401 = vmax.xlane.f32.xlu0 %v400
    %v402 = vpop.xlane.xlu0 %401
    %v403 = vsel %vm399, %v398, -inf
    %404 = vmax.xlane.f32.xlu0 %v403
    %v405 = vpop.xlane.xlu0 %404
    %v406 = vsub.f32 %v397, %v402
    %v407 = vsub.f32 %v398, %v405
    %v408 = vmul.f32 %v406, 1.442695
    %v409 = vpow.pop %v408
    %v410 = vmul.f32 %v407, 1.442695
    %v411 = vpow.pop %v410
    %v412 = vsel %vm399, %v409, 0.0
    %413 = vadd.xlane.f32.xlu0 %v412
    %v414 = vpop.xlane.xlu0 %413
    %v415 = vsel %vm399, %v411, 0.0
    %416 = vadd.xlane.f32.xlu0 %v415
    %v417 = vpop.xlane.xlu0 %416
    %v418 = vrcp.pop %v414
    %v419 = vrcp.pop %v417
    %v420 = vmul.f32 %v409, %v418
    %v421 = vmul.f32 %v411, %v419
    %v422 = vpack.c.bf16 %v421, %v420
    %424 = vrot.lane.b32.xlu0 %v281, 112
    %v425 = vpop.permute.xlu0 %424
    %v428 = vsel %vm399, %v422, 0
    %430 = vmatprep.subr.bf16.mxu0 0
    %431 = vmatpush1.bf16.msra.mxu0 %v425
    %432 = vmatprep.subr.bf16.mxu0 0
    %433 = vmatpush1.bf16.msra.mxu0 0
    %434 = vmatprep.subr.bf16.mxu0 0
    %435 = vmatpush1.bf16.msra.mxu0 0
    %436 = vmatprep.subr.bf16.mxu0 0
    %437 = vmatpush1.bf16.msra.mxu0 0
    %438 = vmatprep.subr.bf16.mxu0 0
    %439 = vmatpush1.bf16.msra.mxu0 0
    %440 = vmatprep.subr.bf16.mxu0 0
    %441 = vmatpush1.bf16.msra.mxu0 0
    %442 = vmatprep.subr.bf16.mxu0 0
    %443 = vmatpush1.bf16.msra.mxu0 0
    %444 = vmatprep.subr.bf16.mxu0 0
    %445 = vmatpush1.bf16.msra.mxu0 0
    %446 = vmatprep.subr.bf16.mxu0 0
    %447 = vmatpush1.bf16.msra.mxu0 0
    %448 = vmatprep.subr.bf16.mxu0 0
    %449 = vmatpush1.bf16.msra.mxu0 0
    %450 = vmatprep.subr.bf16.mxu0 0
    %451 = vmatpush1.bf16.msra.mxu0 0
    %452 = vmatprep.subr.bf16.mxu0 0
    %453 = vmatpush1.bf16.msra.mxu0 0
    %454 = vmatprep.subr.bf16.mxu0 0
    %455 = vmatpush1.bf16.msra.mxu0 0
    %456 = vmatprep.subr.bf16.mxu0 0
    %457 = vmatpush1.bf16.msra.mxu0 0
    %458 = vmatprep.subr.bf16.mxu0 0
    %459 = vmatpush1.bf16.msra.mxu0 0
    %460 = vmatprep.subr.bf16.mxu0 0
    %461 = vmatpush1.bf16.msra.mxu0 0
    %462 = vmatprep.mubr.bf16.mxu0 0
    %463 = vmatmul.mubr.bf16.gmra.mrb[0].mxu0 %v428
    %v464 = vpop.f32.mrb[0].mxu0
    %v465 = vadd.f32 0.0, %v464
    %v466 = vpop.f32.mrb[0].mxu0
    %v467 = vpop.f32.mrb[0].mxu0
    %v468 = vadd.f32 0.0, %v467
    %v469 = vpop.f32.mrb[0].mxu0
    %470 = vdwg.mxu0
    %473 = vrot.lane.b32.xlu0 %v257, 120
    %v474 = vpop.permute.xlu0 %473
    %475 = vrot.lane.b32.xlu0 %v258, 120
    %v476 = vpop.permute.xlu0 %475
    %v479 = vsel %vm259, %v474, 0.0
    %480 = vadd.xlane.f32.xlu0 %v479
    %v481 = vpop.xlane.xlu0 %480
    %v482 = vsel %vm259, %v476, 0.0
    %483 = vadd.xlane.f32.xlu0 %v482
    %v484 = vpop.xlane.xlu0 %483
    %v485 = vmul.f32 %v481, %v266
    %v486 = vmul.f32 %v484, %v266
    %v487 = vadd.f32 %v485, 1e-05
    %v488 = vadd.f32 %v486, 1e-05
    %v489 = vrsqrt.pop %v487
    %v490 = vrsqrt.pop %v488
    %v491 = vmul.f32 %v243, %v489
    %v492 = vmul.f32 %v246, %v490
    %494 = vrot.lane.b32.xlu0 %v278, 8
    %v495 = vpop.permute.xlu0 %494
    %v497 = vmul.f32 %v491, %v495
    %v498 = vmul.f32 %v492, %v495
    %499 = vrot.lane.b32.xlu0 %v282, 112
    %v500 = vpop.permute.xlu0 %499
    %v502 = vsel %vm259, %v500, 0.0
    %503 = vadd.xlane.f32.xlu0 %v502
    %v504 = vpop.xlane.xlu0 %503
    %v505 = vmul.f32 %v504, %v266
    %v506 = vadd.f32 %v505, 1e-05
    %v507 = vrsqrt.pop %v506
    %v508 = vmul.f32 %v178, %v507
    %509 = vrot.lane.b32.xlu0 %v293, 16
    %v510 = vpop.permute.xlu0 %509
    %v512 = vmul.f32 %v508, %v510
    %513 = vrot.lane.b32.xlu0 %v282, 104
    %v514 = vpop.permute.xlu0 %513
    %v516 = vsel %vm259, %v514, 0.0
    %517 = vadd.xlane.f32.xlu0 %v516
    %v518 = vpop.xlane.xlu0 %517
    %v519 = vmul.f32 %v518, %v266
    %v520 = vadd.f32 %v519, 1e-05
    %v521 = vrsqrt.pop %v520
    %v522 = vmul.f32 %v178, %v521
    %523 = vrot.lane.b32.xlu0 %v293, 24
    %v524 = vpop.permute.xlu0 %523
    %v526 = vmul.f32 %v522, %v524
    %528 = vrot.lane.b32.xlu0 %v526, 120
    %v529 = vpop.permute.xlu0 %528
    %v531 = vpack.c.bf16 %v529, %v512
    %534 = vrot.lane.b32.xlu0 %v497, 120
    %v535 = vpop.permute.xlu0 %534
    %536 = vrot.lane.b32.xlu0 %v498, 120
    %v537 = vpop.permute.xlu0 %536
    %540 = vxpose.xlu0.b32.start [1/16] %v535, 128
    %541 = vxpose.xlu0.b32.cont [2/16] %v537, 128
    %542 = vxpose.xlu0.b32.cont [3/16] 0.0, 128
    %543 = vxpose.xlu0.b32.cont [4/16] 0.0, 128
    %544 = vxpose.xlu0.b32.cont [5/16] 0.0, 128
    %545 = vxpose.xlu0.b32.cont [6/16] 0.0, 128
    %546 = vxpose.xlu0.b32.cont [7/16] 0.0, 128
    %547 = vxpose.xlu0.b32.cont [8/16] 0.0, 128
    %548 = vxpose.xlu0.b32.cont [9/16] 0.0, 128
    %549 = vxpose.xlu0.b32.cont [10/16] 0.0, 128
    %550 = vxpose.xlu0.b32.cont [11/16] 0.0, 128
    %551 = vxpose.xlu0.b32.cont [12/16] 0.0, 128
    %552 = vxpose.xlu0.b32.cont [13/16] 0.0, 128
    %553 = vxpose.xlu0.b32.cont [14/16] 0.0, 128
    %554 = vxpose.xlu0.b32.cont [15/16] 0.0, 128
    %555 = vxpose.xlu0.b32.end [16/16] 0.0, 128
    %v556 = vpop.trf.xlu0
    %v557 = vpop.trf.xlu0
    %v558 = vpop.trf.xlu0
    %v559 = vpop.trf.xlu0
    %v560 = vpop.trf.xlu0
    %v561 = vpop.trf.xlu0
    %v562 = vpop.trf.xlu0
    %v563 = vpop.trf.xlu0
    %v564 = vpop.trf.xlu0
    %v565 = vpop.trf.xlu0
    %v566 = vpop.trf.xlu0
    %v567 = vpop.trf.xlu0
    %v568 = vpop.trf.xlu0
    %v569 = vpop.trf.xlu0
    %v570 = vpop.trf.xlu0
    %v571 = vpop.trf.xlu0
    %v572 = vpack.c.bf16 %v556, %v556
    %574 = vrot.lane.b32.xlu0 %v531, 112
    %v575 = vpop.permute.xlu0 %574
    %v577 = vsel %vm259, %v575, 0
    %v580 = vsel %vm352, %v572, 0
    %582 = vmatprep.subr.bf16.mxu0 0
    %583 = vmatpush1.bf16.msra.mxu0 %v580
    %584 = vmatprep.subr.bf16.mxu0 0
    %585 = vmatpush1.bf16.msra.mxu0 0
    %586 = vmatprep.subr.bf16.mxu0 0
    %587 = vmatpush1.bf16.msra.mxu0 0
    %588 = vmatprep.subr.bf16.mxu0 0
    %589 = vmatpush1.bf16.msra.mxu0 0
    %590 = vmatprep.subr.bf16.mxu0 0
    %591 = vmatpush1.bf16.msra.mxu0 0
    %592 = vmatprep.subr.bf16.mxu0 0
    %593 = vmatpush1.bf16.msra.mxu0 0
    %594 = vmatprep.subr.bf16.mxu0 0
    %595 = vmatpush1.bf16.msra.mxu0 0
    %596 = vmatprep.subr.bf16.mxu0 0
    %597 = vmatpush1.bf16.msra.mxu0 0
    %598 = vmatprep.subr.bf16.mxu0 0
    %599 = vmatpush1.bf16.msra.mxu0 0
    %600 = vmatprep.subr.bf16.mxu0 0
    %601 = vmatpush1.bf16.msra.mxu0 0
    %602 = vmatprep.subr.bf16.mxu0 0
    %603 = vmatpush1.bf16.msra.mxu0 0
    %604 = vmatprep.subr.bf16.mxu0 0
    %605 = vmatpush1.bf16.msra.mxu0 0
    %606 = vmatprep.subr.bf16.mxu0 0
    %607 = vmatpush1.bf16.msra.mxu0 0
    %608 = vmatprep.subr.bf16.mxu0 0
    %609 = vmatpush1.bf16.msra.mxu0 0
    %610 = vmatprep.subr.bf16.mxu0 0
    %611 = vmatpush1.bf16.msra.mxu0 0
    %612 = vmatprep.subr.bf16.mxu0 0
    %613 = vmatpush1.bf16.msra.mxu0 0
    %614 = vmatprep.mubr.bf16.mxu0 0
    %615 = vmatmul.mubr.bf16.gmra.mrb[0].mxu0 %v577
    %v616 = vpop.f32.mrb[0].mxu0
    %v617 = vadd.f32 0.0, %v616
    %v618 = vpop.f32.mrb[0].mxu0
    %v619 = vpop.f32.mrb[0].mxu0
    %v620 = vadd.f32 0.0, %v619
    %v621 = vpop.f32.mrb[0].mxu0
    %622 = vdwg.mxu0
    %v623 = vmul.f32 %v617, 0.35355338
    %v624 = vmul.f32 %v620, 0.35355338
    %v625 = vsel %vm399, %v623, -inf
    %626 = vmax.xlane.f32.xlu0 %v625
    %v627 = vpop.xlane.xlu0 %626
    %v628 = vsel %vm399, %v624, -inf
    %629 = vmax.xlane.f32.xlu0 %v628
    %v630 = vpop.xlane.xlu0 %629
    %v631 = vsub.f32 %v623, %v627
    %v632 = vsub.f32 %v624, %v630
    %v633 = vmul.f32 %v631, 1.442695
    %v634 = vpow.pop %v633
    %v635 = vmul.f32 %v632, 1.442695
    %v636 = vpow.pop %v635
    %v637 = vsel %vm399, %v634, 0.0
    %638 = vadd.xlane.f32.xlu0 %v637
    %v639 = vpop.xlane.xlu0 %638
    %v640 = vsel %vm399, %v636, 0.0
    %641 = vadd.xlane.f32.xlu0 %v640
    %v642 = vpop.xlane.xlu0 %641
    %v643 = vrcp.pop %v639
    %v644 = vrcp.pop %v642
    %v645 = vmul.f32 %v634, %v643
    %v646 = vmul.f32 %v636, %v644
    %v647 = vpack.c.bf16 %v646, %v645
    %648 = vrot.lane.b32.xlu0 %v281, 104
    %v649 = vpop.permute.xlu0 %648
    %v652 = vsel %vm399, %v647, 0
    %654 = vmatprep.subr.bf16.mxu0 0
    %655 = vmatpush1.bf16.msra.mxu0 %v649
    %656 = vmatprep.subr.bf16.mxu0 0
    %657 = vmatpush1.bf16.msra.mxu0 0
    %658 = vmatprep.subr.bf16.mxu0 0
    %659 = vmatpush1.bf16.msra.mxu0 0
    %660 = vmatprep.subr.bf16.mxu0 0
    %661 = vmatpush1.bf16.msra.mxu0 0
    %662 = vmatprep.subr.bf16.mxu0 0
    %663 = vmatpush1.bf16.msra.mxu0 0
    %664 = vmatprep.subr.bf16.mxu0 0
    %665 = vmatpush1.bf16.msra.mxu0 0
    %666 = vmatprep.subr.bf16.mxu0 0
    %667 = vmatpush1.bf16.msra.mxu0 0
    %668 = vmatprep.subr.bf16.mxu0 0
    %669 = vmatpush1.bf16.msra.mxu0 0
    %670 = vmatprep.subr.bf16.mxu0 0
    %671 = vmatpush1.bf16.msra.mxu0 0
    %672 = vmatprep.subr.bf16.mxu0 0
    %673 = vmatpush1.bf16.msra.mxu0 0
    %674 = vmatprep.subr.bf16.mxu0 0
    %675 = vmatpush1.bf16.msra.mxu0 0
    %676 = vmatprep.subr.bf16.mxu0 0
    %677 = vmatpush1.bf16.msra.mxu0 0
    %678 = vmatprep.subr.bf16.mxu0 0
    %679 = vmatpush1.bf16.msra.mxu0 0
    %680 = vmatprep.subr.bf16.mxu0 0
    %681 = vmatpush1.bf16.msra.mxu0 0
    %682 = vmatprep.subr.bf16.mxu0 0
    %683 = vmatpush1.bf16.msra.mxu0 0
    %684 = vmatprep.subr.bf16.mxu0 0
    %685 = vmatpush1.bf16.msra.mxu0 0
    %686 = vmatprep.mubr.bf16.mxu0 0
    %687 = vmatmul.mubr.bf16.gmra.mrb[0].mxu0 %v652
    %v688 = vpop.f32.mrb[0].mxu0
    %v689 = vadd.f32 0.0, %v688
    %v690 = vpop.f32.mrb[0].mxu0
    %v691 = vpop.f32.mrb[0].mxu0
    %v692 = vadd.f32 0.0, %v691
    %v693 = vpop.f32.mrb[0].mxu0
    %694 = vdwg.mxu0
    %696 = vrot.lane.b32.xlu0 %v468, 8
    %v697 = vpop.permute.xlu0 %696
    %700 = vrot.lane.b32.xlu0 %v689, 16
    %v701 = vpop.permute.xlu0 %700
    %704 = vrot.lane.b32.xlu0 %v692, 24
    %v705 = vpop.permute.xlu0 %704
    %v707 = vsel %vm259, %v465, %v697
    %v708 = vsel %vm399, %v707, %v701
    %vm709 = vcmask 195584
    %v710 = vsel %vm709, %v708, %v705
    %v711 = vmul.f32 %v251, %v251
    %v712 = vmul.f32 %v254, %v254
    %v713 = vsel %vm259, %v711, 0.0
    %714 = vadd.xlane.f32.xlu0 %v713
    %v715 = vpop.xlane.xlu0 %714
    %v716 = vsel %vm259, %v712, 0.0
    %717 = vadd.xlane.f32.xlu0 %v716
    %v718 = vpop.xlane.xlu0 %717
    %v719 = vmul.f32 %v715, %v266
    %v720 = vmul.f32 %v718, %v266
    %v721 = vadd.f32 %v719, 1e-05
    %v722 = vadd.f32 %v720, 1e-05
    %v723 = vrsqrt.pop %v721
    %v724 = vrsqrt.pop %v722
    %v725 = vmul.f32 %v251, %v723
    %v726 = vmul.f32 %v254, %v724
    %v727 = vmul.f32 %v725, %v278
    %v728 = vmul.f32 %v726, %v278
    %v729 = vpack.c.bf16 %v254, %v251
    %v730 = vmul.f32 %v181, %v181
    %v731 = vsel %vm259, %v730, 0.0
    %732 = vadd.xlane.f32.xlu0 %v731
    %v733 = vpop.xlane.xlu0 %732
    %v734 = vmul.f32 %v733, %v266
    %v735 = vadd.f32 %v734, 1e-05
    %v736 = vrsqrt.pop %v735
    %v737 = vmul.f32 %v181, %v736
    %v738 = vmul.f32 %v737, %v293
    %740 = vrot.lane.b32.xlu0 %v730, 120
    %v741 = vpop.permute.xlu0 %740
    %v743 = vsel %vm259, %v741, 0.0
    %744 = vadd.xlane.f32.xlu0 %v743
    %v745 = vpop.xlane.xlu0 %744
    %v746 = vmul.f32 %v745, %v266
    %v747 = vadd.f32 %v746, 1e-05
    %v748 = vrsqrt.pop %v747
    %v749 = vmul.f32 %v181, %v748
    %v750 = vmul.f32 %v749, %v308
    %752 = vrot.lane.b32.xlu0 %v750, 120
    %v753 = vpop.permute.xlu0 %752
    %v755 = vpack.c.bf16 %v753, %v738
    %756 = vxpose.xlu0.b32.start [1/16] %v727, 128
    %757 = vxpose.xlu0.b32.cont [2/16] %v728, 128
    %758 = vxpose.xlu0.b32.cont [3/16] 0.0, 128
    %759 = vxpose.xlu0.b32.cont [4/16] 0.0, 128
    %760 = vxpose.xlu0.b32.cont [5/16] 0.0, 128
    %761 = vxpose.xlu0.b32.cont [6/16] 0.0, 128
    %762 = vxpose.xlu0.b32.cont [7/16] 0.0, 128
    %763 = vxpose.xlu0.b32.cont [8/16] 0.0, 128
    %764 = vxpose.xlu0.b32.cont [9/16] 0.0, 128
    %765 = vxpose.xlu0.b32.cont [10/16] 0.0, 128
    %766 = vxpose.xlu0.b32.cont [11/16] 0.0, 128
    %767 = vxpose.xlu0.b32.cont [12/16] 0.0, 128
    %768 = vxpose.xlu0.b32.cont [13/16] 0.0, 128
    %769 = vxpose.xlu0.b32.cont [14/16] 0.0, 128
    %770 = vxpose.xlu0.b32.cont [15/16] 0.0, 128
    %771 = vxpose.xlu0.b32.end [16/16] 0.0, 128
    %v772 = vpop.trf.xlu0
    %v773 = vpop.trf.xlu0
    %v774 = vpop.trf.xlu0
    %v775 = vpop.trf.xlu0
    %v776 = vpop.trf.xlu0
    %v777 = vpop.trf.xlu0
    %v778 = vpop.trf.xlu0
    %v779 = vpop.trf.xlu0
    %v780 = vpop.trf.xlu0
    %v781 = vpop.trf.xlu0
    %v782 = vpop.trf.xlu0
    %v783 = vpop.trf.xlu0
    %v784 = vpop.trf.xlu0
    %v785 = vpop.trf.xlu0
    %v786 = vpop.trf.xlu0
    %v787 = vpop.trf.xlu0
    %v788 = vpack.c.bf16 %v772, %v772
    %v790 = vsel %vm259, %v755, 0
    %v793 = vsel %vm352, %v788, 0
    %795 = vmatprep.subr.bf16.mxu0 0
    %796 = vmatpush1.bf16.msra.mxu0 %v793
    %797 = vmatprep.subr.bf16.mxu0 0
    %798 = vmatpush1.bf16.msra.mxu0 0
    %799 = vmatprep.subr.bf16.mxu0 0
    %800 = vmatpush1.bf16.msra.mxu0 0
    %801 = vmatprep.subr.bf16.mxu0 0
    %802 = vmatpush1.bf16.msra.mxu0 0
    %803 = vmatprep.subr.bf16.mxu0 0
    %804 = vmatpush1.bf16.msra.mxu0 0
    %805 = vmatprep.subr.bf16.mxu0 0
    %806 = vmatpush1.bf16.msra.mxu0 0
    %807 = vmatprep.subr.bf16.mxu0 0
    %808 = vmatpush1.bf16.msra.mxu0 0
    %809 = vmatprep.subr.bf16.mxu0 0
    %810 = vmatpush1.bf16.msra.mxu0 0
    %811 = vmatprep.subr.bf16.mxu0 0
    %812 = vmatpush1.bf16.msra.mxu0 0
    %813 = vmatprep.subr.bf16.mxu0 0
    %814 = vmatpush1.bf16.msra.mxu0 0
    %815 = vmatprep.subr.bf16.mxu0 0
    %816 = vmatpush1.bf16.msra.mxu0 0
    %817 = vmatprep.subr.bf16.mxu0 0
    %818 = vmatpush1.bf16.msra.mxu0 0
    %819 = vmatprep.subr.bf16.mxu0 0
    %820 = vmatpush1.bf16.msra.mxu0 0
    %821 = vmatprep.subr.bf16.mxu0 0
    %822 = vmatpush1.bf16.msra.mxu0 0
    %823 = vmatprep.subr.bf16.mxu0 0
    %824 = vmatpush1.bf16.msra.mxu0 0
    %825 = vmatprep.subr.bf16.mxu0 0
    %826 = vmatpush1.bf16.msra.mxu0 0
    %827 = vmatprep.mubr.bf16.mxu0 0
    %828 = vmatmul.mubr.bf16.gmra.mrb[0].mxu0 %v790
    %v829 = vpop.f32.mrb[0].mxu0
    %v830 = vadd.f32 0.0, %v829
    %v831 = vpop.f32.mrb[0].mxu0
    %v832 = vpop.f32.mrb[0].mxu0
    %v833 = vadd.f32 0.0, %v832
    %v834 = vpop.f32.mrb[0].mxu0
    %835 = vdwg.mxu0
    %v836 = vmul.f32 %v830, 0.35355338
    %v837 = vmul.f32 %v833, 0.35355338
    %v838 = vsel %vm399, %v836, -inf
    %839 = vmax.xlane.f32.xlu0 %v838
    %v840 = vpop.xlane.xlu0 %839
    %v841 = vsel %vm399, %v837, -inf
    %842 = vmax.xlane.f32.xlu0 %v841
    %v843 = vpop.xlane.xlu0 %842
    %v844 = vsub.f32 %v836, %v840
    %v845 = vsub.f32 %v837, %v843
    %v846 = vmul.f32 %v844, 1.442695
    %v847 = vpow.pop %v846
    %v848 = vmul.f32 %v845, 1.442695
    %v849 = vpow.pop %v848
    %v850 = vsel %vm399, %v847, 0.0
    %851 = vadd.xlane.f32.xlu0 %v850
    %v852 = vpop.xlane.xlu0 %851
    %v853 = vsel %vm399, %v849, 0.0
    %854 = vadd.xlane.f32.xlu0 %v853
    %v855 = vpop.xlane.xlu0 %854
    %v856 = vrcp.pop %v852
    %v857 = vrcp.pop %v855
    %v858 = vmul.f32 %v847, %v856
    %v859 = vmul.f32 %v849, %v857
    %v860 = vpack.c.bf16 %v859, %v858
    %862 = vrot.lane.b32.xlu0 %v729, 112
    %v863 = vpop.permute.xlu0 %862
    %v866 = vsel %vm399, %v860, 0
    %868 = vmatprep.subr.bf16.mxu0 0
    %869 = vmatpush1.bf16.msra.mxu0 %v863
    %870 = vmatprep.subr.bf16.mxu0 0
    %871 = vmatpush1.bf16.msra.mxu0 0
    %872 = vmatprep.subr.bf16.mxu0 0
    %873 = vmatpush1.bf16.msra.mxu0 0
    %874 = vmatprep.subr.bf16.mxu0 0
    %875 = vmatpush1.bf16.msra.mxu0 0
    %876 = vmatprep.subr.bf16.mxu0 0
    %877 = vmatpush1.bf16.msra.mxu0 0
    %878 = vmatprep.subr.bf16.mxu0 0
    %879 = vmatpush1.bf16.msra.mxu0 0
    %880 = vmatprep.subr.bf16.mxu0 0
    %881 = vmatpush1.bf16.msra.mxu0 0
    %882 = vmatprep.subr.bf16.mxu0 0
    %883 = vmatpush1.bf16.msra.mxu0 0
    %884 = vmatprep.subr.bf16.mxu0 0
    %885 = vmatpush1.bf16.msra.mxu0 0
    %886 = vmatprep.subr.bf16.mxu0 0
    %887 = vmatpush1.bf16.msra.mxu0 0
    %888 = vmatprep.subr.bf16.mxu0 0
    %889 = vmatpush1.bf16.msra.mxu0 0
    %890 = vmatprep.subr.bf16.mxu0 0
    %891 = vmatpush1.bf16.msra.mxu0 0
    %892 = vmatprep.subr.bf16.mxu0 0
    %893 = vmatpush1.bf16.msra.mxu0 0
    %894 = vmatprep.subr.bf16.mxu0 0
    %895 = vmatpush1.bf16.msra.mxu0 0
    %896 = vmatprep.subr.bf16.mxu0 0
    %897 = vmatpush1.bf16.msra.mxu0 0
    %898 = vmatprep.subr.bf16.mxu0 0
    %899 = vmatpush1.bf16.msra.mxu0 0
    %900 = vmatprep.mubr.bf16.mxu0 0
    %901 = vmatmul.mubr.bf16.gmra.mrb[0].mxu0 %v866
    %v902 = vpop.f32.mrb[0].mxu0
    %v903 = vadd.f32 0.0, %v902
    %v904 = vpop.f32.mrb[0].mxu0
    %v905 = vpop.f32.mrb[0].mxu0
    %v906 = vadd.f32 0.0, %v905
    %v907 = vpop.f32.mrb[0].mxu0
    %908 = vdwg.mxu0
    %911 = vrot.lane.b32.xlu0 %v711, 120
    %v912 = vpop.permute.xlu0 %911
    %913 = vrot.lane.b32.xlu0 %v712, 120
    %v914 = vpop.permute.xlu0 %913
    %v917 = vsel %vm259, %v912, 0.0
    %918 = vadd.xlane.f32.xlu0 %v917
    %v919 = vpop.xlane.xlu0 %918
    %v920 = vsel %vm259, %v914, 0.0
    %921 = vadd.xlane.f32.xlu0 %v920
    %v922 = vpop.xlane.xlu0 %921
    %v923 = vmul.f32 %v919, %v266
    %v924 = vmul.f32 %v922, %v266
    %v925 = vadd.f32 %v923, 1e-05
    %v926 = vadd.f32 %v924, 1e-05
    %v927 = vrsqrt.pop %v925
    %v928 = vrsqrt.pop %v926
    %v929 = vmul.f32 %v251, %v927
    %v930 = vmul.f32 %v254, %v928
    %v931 = vmul.f32 %v929, %v495
    %v932 = vmul.f32 %v930, %v495
    %933 = vrot.lane.b32.xlu0 %v730, 112
    %v934 = vpop.permute.xlu0 %933
    %v936 = vsel %vm259, %v934, 0.0
    %937 = vadd.xlane.f32.xlu0 %v936
    %v938 = vpop.xlane.xlu0 %937
    %v939 = vmul.f32 %v938, %v266
    %v940 = vadd.f32 %v939, 1e-05
    %v941 = vrsqrt.pop %v940
    %v942 = vmul.f32 %v181, %v941
    %v943 = vmul.f32 %v942, %v510
    %944 = vrot.lane.b32.xlu0 %v730, 104
    %v945 = vpop.permute.xlu0 %944
    %v947 = vsel %vm259, %v945, 0.0
    %948 = vadd.xlane.f32.xlu0 %v947
    %v949 = vpop.xlane.xlu0 %948
    %v950 = vmul.f32 %v949, %v266
    %v951 = vadd.f32 %v950, 1e-05
    %v952 = vrsqrt.pop %v951
    %v953 = vmul.f32 %v181, %v952
    %v954 = vmul.f32 %v953, %v524
    %956 = vrot.lane.b32.xlu0 %v954, 120
    %v957 = vpop.permute.xlu0 %956
    %v959 = vpack.c.bf16 %v957, %v943
    %962 = vrot.lane.b32.xlu0 %v931, 120
    %v963 = vpop.permute.xlu0 %962
    %964 = vrot.lane.b32.xlu0 %v932, 120
    %v965 = vpop.permute.xlu0 %964
    %968 = vxpose.xlu0.b32.start [1/16] %v963, 128
    %969 = vxpose.xlu0.b32.cont [2/16] %v965, 128
    %970 = vxpose.xlu0.b32.cont [3/16] 0.0, 128
    %971 = vxpose.xlu0.b32.cont [4/16] 0.0, 128
    %972 = vxpose.xlu0.b32.cont [5/16] 0.0, 128
    %973 = vxpose.xlu0.b32.cont [6/16] 0.0, 128
    %974 = vxpose.xlu0.b32.cont [7/16] 0.0, 128
    %975 = vxpose.xlu0.b32.cont [8/16] 0.0, 128
    %976 = vxpose.xlu0.b32.cont [9/16] 0.0, 128
    %977 = vxpose.xlu0.b32.cont [10/16] 0.0, 128
    %978 = vxpose.xlu0.b32.cont [11/16] 0.0, 128
    %979 = vxpose.xlu0.b32.cont [12/16] 0.0, 128
    %980 = vxpose.xlu0.b32.cont [13/16] 0.0, 128
    %981 = vxpose.xlu0.b32.cont [14/16] 0.0, 128
    %982 = vxpose.xlu0.b32.cont [15/16] 0.0, 128
    %983 = vxpose.xlu0.b32.end [16/16] 0.0, 128
    %v984 = vpop.trf.xlu0
    %v985 = vpop.trf.xlu0
    %v986 = vpop.trf.xlu0
    %v987 = vpop.trf.xlu0
    %v988 = vpop.trf.xlu0
    %v989 = vpop.trf.xlu0
    %v990 = vpop.trf.xlu0
    %v991 = vpop.trf.xlu0
    %v992 = vpop.trf.xlu0
    %v993 = vpop.trf.xlu0
    %v994 = vpop.trf.xlu0
    %v995 = vpop.trf.xlu0
    %v996 = vpop.trf.xlu0
    %v997 = vpop.trf.xlu0
    %v998 = vpop.trf.xlu0
    %v999 = vpop.trf.xlu0
    %v1000 = vpack.c.bf16 %v984, %v984
    %1002 = vrot.lane.b32.xlu0 %v959, 112
    %v1003 = vpop.permute.xlu0 %1002
    %v1005 = vsel %vm259, %v1003, 0
    %v1008 = vsel %vm352, %v1000, 0
    %1010 = vmatprep.subr.bf16.mxu0 0
    %1011 = vmatpush1.bf16.msra.mxu0 %v1008
    %1012 = vmatprep.subr.bf16.mxu0 0
    %1013 = vmatpush1.bf16.msra.mxu0 0
    %1014 = vmatprep.subr.bf16.mxu0 0
    %1015 = vmatpush1.bf16.msra.mxu0 0
    %1016 = vmatprep.subr.bf16.mxu0 0
    %1017 = vmatpush1.bf16.msra.mxu0 0
    %1018 = vmatprep.subr.bf16.mxu0 0
    %1019 = vmatpush1.bf16.msra.mxu0 0
    %1020 = vmatprep.subr.bf16.mxu0 0
    %1021 = vmatpush1.bf16.msra.mxu0 0
    %1022 = vmatprep.subr.bf16.mxu0 0
    %1023 = vmatpush1.bf16.msra.mxu0 0
    %1024 = vmatprep.subr.bf16.mxu0 0
    %1025 = vmatpush1.bf16.msra.mxu0 0
    %1026 = vmatprep.subr.bf16.mxu0 0
    %1027 = vmatpush1.bf16.msra.mxu0 0
    %1028 = vmatprep.subr.bf16.mxu0 0
    %1029 = vmatpush1.bf16.msra.mxu0 0
    %1030 = vmatprep.subr.bf16.mxu0 0
    %1031 = vmatpush1.bf16.msra.mxu0 0
    %1032 = vmatprep.subr.bf16.mxu0 0
    %1033 = vmatpush1.bf16.msra.mxu0 0
    %1034 = vmatprep.subr.bf16.mxu0 0
    %1035 = vmatpush1.bf16.msra.mxu0 0
    %1036 = vmatprep.subr.bf16.mxu0 0
    %1037 = vmatpush1.bf16.msra.mxu0 0
    %1038 = vmatprep.subr.bf16.mxu0 0
    %1039 = vmatpush1.bf16.msra.mxu0 0
    %1040 = vmatprep.subr.bf16.mxu0 0
    %1041 = vmatpush1.bf16.msra.mxu0 0
    %1042 = vmatprep.mubr.bf16.mxu0 0
    %1043 = vmatmul.mubr.bf16.gmra.mrb[0].mxu0 %v1005
    %v1044 = vpop.f32.mrb[0].mxu0
    %v1045 = vadd.f32 0.0, %v1044
    %v1046 = vpop.f32.mrb[0].mxu0
    %v1047 = vpop.f32.mrb[0].mxu0
    %v1048 = vadd.f32 0.0, %v1047
    %v1049 = vpop.f32.mrb[0].mxu0
    %1050 = vdwg.mxu0
    %v1051 = vmul.f32 %v1045, 0.35355338
    %v1052 = vmul.f32 %v1048, 0.35355338
    %v1053 = vsel %vm399, %v1051, -inf
    %1054 = vmax.xlane.f32.xlu0 %v1053
    %v1055 = vpop.xlane.xlu0 %1054
    %v1056 = vsel %vm399, %v1052, -inf
    %1057 = vmax.xlane.f32.xlu0 %v1056
    %v1058 = vpop.xlane.xlu0 %1057
    %v1059 = vsub.f32 %v1051, %v1055
    %v1060 = vsub.f32 %v1052, %v1058
    %v1061 = vmul.f32 %v1059, 1.442695
    %v1062 = vpow.pop %v1061
    %v1063 = vmul.f32 %v1060, 1.442695
    %v1064 = vpow.pop %v1063
    %v1065 = vsel %vm399, %v1062, 0.0
    %1066 = vadd.xlane.f32.xlu0 %v1065
    %v1067 = vpop.xlane.xlu0 %1066
    %v1068 = vsel %vm399, %v1064, 0.0
    %1069 = vadd.xlane.f32.xlu0 %v1068
    %v1070 = vpop.xlane.xlu0 %1069
    %v1071 = vrcp.pop %v1067
    %v1072 = vrcp.pop %v1070
    %v1073 = vmul.f32 %v1062, %v1071
    %v1074 = vmul.f32 %v1064, %v1072
    %v1075 = vpack.c.bf16 %v1074, %v1073
    %1076 = vrot.lane.b32.xlu0 %v729, 104
    %v1077 = vpop.permute.xlu0 %1076
    %v1080 = vsel %vm399, %v1075, 0
    %1082 = vmatprep.subr.bf16.mxu0 0
    %1083 = vmatpush1.bf16.msra.mxu0 %v1077
    %1084 = vmatprep.subr.bf16.mxu0 0
    %1085 = vmatpush1.bf16.msra.mxu0 0
    %1086 = vmatprep.subr.bf16.mxu0 0
    %1087 = vmatpush1.bf16.msra.mxu0 0
    %1088 = vmatprep.subr.bf16.mxu0 0
    %1089 = vmatpush1.bf16.msra.mxu0 0
    %1090 = vmatprep.subr.bf16.mxu0 0
    %1091 = vmatpush1.bf16.msra.mxu0 0
    %1092 = vmatprep.subr.bf16.mxu0 0
    %1093 = vmatpush1.bf16.msra.mxu0 0
    %1094 = vmatprep.subr.bf16.mxu0 0
    %1095 = vmatpush1.bf16.msra.mxu0 0
    %1096 = vmatprep.subr.bf16.mxu0 0
    %1097 = vmatpush1.bf16.msra.mxu0 0
    %1098 = vmatprep.subr.bf16.mxu0 0
    %1099 = vmatpush1.bf16.msra.mxu0 0
    %1100 = vmatprep.subr.bf16.mxu0 0
    %1101 = vmatpush1.bf16.msra.mxu0 0
    %1102 = vmatprep.subr.bf16.mxu0 0
    %1103 = vmatpush1.bf16.msra.mxu0 0
    %1104 = vmatprep.subr.bf16.mxu0 0
    %1105 = vmatpush1.bf16.msra.mxu0 0
    %1106 = vmatprep.subr.bf16.mxu0 0
    %1107 = vmatpush1.bf16.msra.mxu0 0
    %1108 = vmatprep.subr.bf16.mxu0 0
    %1109 = vmatpush1.bf16.msra.mxu0 0
    %1110 = vmatprep.subr.bf16.mxu0 0
    %1111 = vmatpush1.bf16.msra.mxu0 0
    %1112 = vmatprep.subr.bf16.mxu0 0
    %1113 = vmatpush1.bf16.msra.mxu0 0
    %1114 = vmatprep.mubr.bf16.mxu0 0
    %1115 = vmatmul.mubr.bf16.gmra.mrb[0].mxu0 %v1080
    %v1116 = vpop.f32.mrb[0].mxu0
    %v1117 = vadd.f32 0.0, %v1116
    %v1118 = vpop.f32.mrb[0].mxu0
    %v1119 = vpop.f32.mrb[0].mxu0
    %v1120 = vadd.f32 0.0, %v1119
    %v1121 = vpop.f32.mrb[0].mxu0
    %1122 = vdwg.mxu0
    %1124 = vrot.lane.b32.xlu0 %v906, 8
    %v1125 = vpop.permute.xlu0 %1124
    %1128 = vrot.lane.b32.xlu0 %v1117, 16
    %v1129 = vpop.permute.xlu0 %1128
    %1132 = vrot.lane.b32.xlu0 %v1120, 24
    %v1133 = vpop.permute.xlu0 %1132
    %v1135 = vsel %vm259, %v903, %v1125
    %v1136 = vsel %vm399, %v1135, %v1129
    %v1137 = vsel %vm709, %v1136, %v1133
    %v1138 = vpack.c.bf16 %v1137, %v710
    %v1139 = vld [vmem:[#allocation7] sm:$0xf]
    %v1140 = vld [vmem:[#allocation7 + $0x4] sm:$0xf]
    %v1141 = vld [vmem:[#allocation7 + $0x8] sm:$0xf]
    %v1142 = vld [vmem:[#allocation7 + $0xc] sm:$0xf]
    %v1147 = vunpack.c.l.b16 %v1139
    %v1148 = vunpack.c.l.b16 %v1140
    %v1149 = vunpack.c.l.b16 %v1141
    %v1150 = vunpack.c.l.b16 %v1142
    %v1151 = vpack.c.b16 %v1148, %v1147
    %v1152 = vpack.c.b16 %v1150, %v1149
    %v1156 = vsel %vm101, %v1138, 0
    %1158 = vmatprep.subr.bf16.mxu0 0
    %1159 = vmatpush1.bf16.msra.mxu0 %v1151
    %1160 = vmatprep.subr.bf16.mxu0 0
    %1161 = vmatpush1.bf16.msra.mxu0 %v1152
    %1162 = vmatprep.subr.bf16.mxu0 0
    %1163 = vmatpush1.bf16.msra.mxu0 0
    %1164 = vmatprep.subr.bf16.mxu0 0
    %1165 = vmatpush1.bf16.msra.mxu0 0
    %1166 = vmatprep.subr.bf16.mxu0 0
    %1167 = vmatpush1.bf16.msra.mxu0 0
    %1168 = vmatprep.subr.bf16.mxu0 0
    %1169 = vmatpush1.bf16.msra.mxu0 0
    %1170 = vmatprep.subr.bf16.mxu0 0
    %1171 = vmatpush1.bf16.msra.mxu0 0
    %1172 = vmatprep.subr.bf16.mxu0 0
    %1173 = vmatpush1.bf16.msra.mxu0 0
    %1174 = vmatprep.subr.bf16.mxu0 0
    %1175 = vmatpush1.bf16.msra.mxu0 0
    %1176 = vmatprep.subr.bf16.mxu0 0
    %1177 = vmatpush1.bf16.msra.mxu0 0
    %1178 = vmatprep.subr.bf16.mxu0 0
    %1179 = vmatpush1.bf16.msra.mxu0 0
    %1180 = vmatprep.subr.bf16.mxu0 0
    %1181 = vmatpush1.bf16.msra.mxu0 0
    %1182 = vmatprep.subr.bf16.mxu0 0
    %1183 = vmatpush1.bf16.msra.mxu0 0
    %1184 = vmatprep.subr.bf16.mxu0 0
    %1185 = vmatpush1.bf16.msra.mxu0 0
    %1186 = vmatprep.subr.bf16.mxu0 0
    %1187 = vmatpush1.bf16.msra.mxu0 0
    %1188 = vmatprep.subr.bf16.mxu0 0
    %1189 = vmatpush1.bf16.msra.mxu0 0
    %1190 = vmatprep.mubr.bf16.mxu0 0
    %1191 = vmatmul.mubr.bf16.gmra.mrb[0].mxu0 %v1156
    %v1192 = vpop.f32.mrb[0].mxu0
    %v1193 = vadd.f32 0.0, %v1192
    %v1194 = vpop.f32.mrb[0].mxu0
    %v1195 = vpop.f32.mrb[0].mxu0
    %v1196 = vadd.f32 0.0, %v1195
    %v1197 = vpop.f32.mrb[0].mxu0
    %1198 = vdwg.mxu0
    %1200 = vset.pattern.permute.xlu0 0
    %1201 = vperm.xlu0 %1200, %v93
    %v1202 = vpop.permute.xlu0 %1201
    %1205 = vset.pattern.permute.xlu0 0
    %1206 = vperm.xlu0 %1205, %v94
    %v1207 = vpop.permute.xlu0 %1206
    %v1209 = vmul.f32 %v1202, %v1193
    %v1210 = vmul.f32 %v1207, %v1196
    %v1211 = vadd.f32 %v87, %v1209
    %v1212 = vadd.f32 %v88, %v1210
    %v1213 = vmul.f32 %v1211, %v1211
    %v1214 = vmul.f32 %v1212, %v1212
    %v1215 = vsel %vm101, %v1213, 0.0
    %1216 = vadd.xlane.f32.xlu0 %v1215
    %v1217 = vpop.xlane.xlu0 %1216
    %v1218 = vsel %vm101, %v1214, 0.0
    %1219 = vadd.xlane.f32.xlu0 %v1218
    %v1220 = vpop.xlane.xlu0 %1219
    %v1221 = vmul.f32 %v1217, %v108
    %v1222 = vmul.f32 %v1220, %v108
    %v1223 = vadd.f32 %v1221, 1e-05
    %v1224 = vadd.f32 %v1222, 1e-05
    %v1225 = vrsqrt.pop %v1223
    %v1226 = vrsqrt.pop %v1224
    %v1227 = vmul.f32 %v1211, %v1225
    %v1228 = vmul.f32 %v1212, %v1226
    %v1229 = vlaneseq
    %v1230 = vshrl.u32 %v1229, 7
    %v1231 = vsub.s32 0, %v1230
    %v1232 = vrot.slane %v96, %v1231
    %v1233 = vmul.f32 %v1227, %v1232
    %v1234 = vmul.f32 %v1228, %v1232
    %v1235 = vpack.c.bf16 %v1234, %v1233
    %v1236 = vld [vmem:[#allocation8] sm:$0xf]
    %v1237 = vld [vmem:[#allocation8 + $0x4] sm:$0xf]
    %v1238 = vld [vmem:[#allocation8 + $0x8] sm:$0xf]
    %v1239 = vld [vmem:[#allocation8 + $0xc] sm:$0xf]
    %v1244 = vunpack.c.l.b16 %v1236
    %v1245 = vunpack.c.l.b16 %v1237
    %v1246 = vunpack.c.l.b16 %v1238
    %v1247 = vunpack.c.l.b16 %v1239
    %v1248 = vpack.c.b16 %v1245, %v1244
    %v1249 = vpack.c.b16 %v1247, %v1246
    %v1253 = vsel %vm101, %v1235, 0
    %1255 = vmatprep.subr.bf16.mxu0 0
    %1256 = vmatpush1.bf16.msra.mxu0 %v1248
    %1257 = vmatprep.subr.bf16.mxu0 0
    %1258 = vmatpush1.bf16.msra.mxu0 %v1249
    %1259 = vmatprep.subr.bf16.mxu0 0
    %1260 = vmatpush1.bf16.msra.mxu0 0
    %1261 = vmatprep.subr.bf16.mxu0 0
    %1262 = vmatpush1.bf16.msra.mxu0 0
    %1263 = vmatprep.subr.bf16.mxu0 0
    %1264 = vmatpush1.bf16.msra.mxu0 0
    %1265 = vmatprep.subr.bf16.mxu0 0
    %1266 = vmatpush1.bf16.msra.mxu0 0
    %1267 = vmatprep.subr.bf16.mxu0 0
    %1268 = vmatpush1.bf16.msra.mxu0 0
    %1269 = vmatprep.subr.bf16.mxu0 0
    %1270 = vmatpush1.bf16.msra.mxu0 0
    %1271 = vmatprep.subr.bf16.mxu0 0
    %1272 = vmatpush1.bf16.msra.mxu0 0
    %1273 = vmatprep.subr.bf16.mxu0 0
    %1274 = vmatpush1.bf16.msra.mxu0 0
    %1275 = vmatprep.subr.bf16.mxu0 0
    %1276 = vmatpush1.bf16.msra.mxu0 0
    %1277 = vmatprep.subr.bf16.mxu0 0
    %1278 = vmatpush1.bf16.msra.mxu0 0
    %1279 = vmatprep.subr.bf16.mxu0 0
    %1280 = vmatpush1.bf16.msra.mxu0 0
    %1281 = vmatprep.subr.bf16.mxu0 0
    %1282 = vmatpush1.bf16.msra.mxu0 0
    %1283 = vmatprep.subr.bf16.mxu0 0
    %1284 = vmatpush1.bf16.msra.mxu0 0
    %1285 = vmatprep.subr.bf16.mxu0 0
    %1286 = vmatpush1.bf16.msra.mxu0 0
    %1287 = vmatprep.mubr.bf16.mxu0 0
    %1288 = vmatmul.mubr.bf16.gmra.mrb[0].mxu0 %v1253
    %v1289 = vpop.f32.mrb[0].mxu0
    %v1290 = vadd.f32 0.0, %v1289
    %v1291 = vpop.f32.mrb[0].mxu0
    %v1292 = vpop.f32.mrb[0].mxu0
    %v1293 = vadd.f32 0.0, %v1292
    %v1294 = vpop.f32.mrb[0].mxu0
    %1295 = vdwg.mxu0
    %v1296 = vxor.u32 %v1290, 2147483648
    %v1297 = vxor.u32 %v1293, 2147483648
    %v1298 = vmul.f32 %v1296, 1.442695
    %v1299 = vpow.pop %v1298
    %v1300 = vmul.f32 %v1297, 1.442695
    %v1301 = vpow.pop %v1300
    %v1302 = vadd.f32 %v1299, 1.0
    %v1303 = vadd.f32 %v1301, 1.0
    %v1304 = vrcp.pop %v1302
    %v1305 = vmul.f32 1.0, %v1304
    %v1306 = vrcp.pop %v1303
    %v1307 = vmul.f32 1.0, %v1306
    %v1308 = vmul.f32 %v1290, %v1305
    %v1309 = vmul.f32 %v1293, %v1307
    %1312 = vrot.lane.b32.xlu0 %v1290, 64
    %v1313 = vpop.permute.xlu0 %1312
    %1314 = vrot.lane.b32.xlu0 %v1293, 64
    %v1315 = vpop.permute.xlu0 %1314
    %v1318 = vmul.f32 %v1308, %v1313
    %v1319 = vmul.f32 %v1309, %v1315
    %v1320 = vpack.c.bf16 %v1319, %v1318
    %v1321 = vld [vmem:[%s8] sm:$0xf]
    %v1322 = vld [vmem:[%s8 + $0x4] sm:$0xf]
    %v1323 = vld [vmem:[%s8 + $0x8] sm:$0xf]
    %v1324 = vld [vmem:[%s8 + $0xc] sm:$0xf]
    %v1325 = vld [vmem:[%s8 + $0x10] sm:$0xf]
    %v1326 = vld [vmem:[%s8 + $0x14] sm:$0xf]
    %v1327 = vld [vmem:[%s8 + $0x18] sm:$0xf]
    %v1328 = vld [vmem:[%s8 + $0x1c] sm:$0xf]
    %v1337 = vunpack.c.l.b16 %v1321
    %v1338 = vunpack.c.l.b16 %v1322
    %v1339 = vunpack.c.l.b16 %v1323
    %v1340 = vunpack.c.l.b16 %v1324
    %v1341 = vunpack.c.l.b16 %v1325
    %v1342 = vunpack.c.l.b16 %v1326
    %v1343 = vunpack.c.l.b16 %v1327
    %v1344 = vunpack.c.l.b16 %v1328
    %v1345 = vpack.c.b16 %v1338, %v1337
    %v1346 = vpack.c.b16 %v1340, %v1339
    %v1347 = vpack.c.b16 %v1342, %v1341
    %v1348 = vpack.c.b16 %v1344, %v1343
    %vm1353 = vcmask 523264
    %v1355 = vsel %vm1353, %v1320, 0
    %1357 = vmatprep.subr.bf16.mxu0 0
    %1358 = vmatpush1.bf16.msra.mxu0 %v1345
    %1359 = vmatprep.subr.bf16.mxu0 0
    %1360 = vmatpush1.bf16.msra.mxu0 %v1346
    %1361 = vmatprep.subr.bf16.mxu0 0
    %1362 = vmatpush1.bf16.msra.mxu0 %v1347
    %1363 = vmatprep.subr.bf16.mxu0 0
    %1364 = vmatpush1.bf16.msra.mxu0 %v1348
    %1365 = vmatprep.subr.bf16.mxu0 0
    %1366 = vmatpush1.bf16.msra.mxu0 0
    %1367 = vmatprep.subr.bf16.mxu0 0
    %1368 = vmatpush1.bf16.msra.mxu0 0
    %1369 = vmatprep.subr.bf16.mxu0 0
    %1370 = vmatpush1.bf16.msra.mxu0 0
    %1371 = vmatprep.subr.bf16.mxu0 0
    %1372 = vmatpush1.bf16.msra.mxu0 0
    %1373 = vmatprep.subr.bf16.mxu0 0
    %1374 = vmatpush1.bf16.msra.mxu0 0
    %1375 = vmatprep.subr.bf16.mxu0 0
    %1376 = vmatpush1.bf16.msra.mxu0 0
    %1377 = vmatprep.subr.bf16.mxu0 0
    %1378 = vmatpush1.bf16.msra.mxu0 0
    %1379 = vmatprep.subr.bf16.mxu0 0
    %1380 = vmatpush1.bf16.msra.mxu0 0
    %1381 = vmatprep.subr.bf16.mxu0 0
    %1382 = vmatpush1.bf16.msra.mxu0 0
    %1383 = vmatprep.subr.bf16.mxu0 0
    %1384 = vmatpush1.bf16.msra.mxu0 0
    %1385 = vmatprep.subr.bf16.mxu0 0
    %1386 = vmatpush1.bf16.msra.mxu0 0
    %1387 = vmatprep.subr.bf16.mxu0 0
    %1388 = vmatpush1.bf16.msra.mxu0 0
    %1389 = vmatprep.mubr.bf16.mxu0 0
    %1390 = vmatmul.mubr.bf16.gmra.mrb[0].mxu0 %v1355
    %v1391 = vpop.f32.mrb[0].mxu0
    %v1392 = vadd.f32 0.0, %v1391
    %v1393 = vpop.f32.mrb[0].mxu0
    %v1394 = vpop.f32.mrb[0].mxu0
    %v1395 = vadd.f32 0.0, %v1394
    %v1396 = vpop.f32.mrb[0].mxu0
    %1397 = vdwg.mxu0
    %1398 = vset.pattern.permute.xlu0 1
    %1399 = vperm.xlu0 %1398, %v93
    %v1400 = vpop.permute.xlu0 %1399
    %1402 = vset.pattern.permute.xlu0 1
    %1403 = vperm.xlu0 %1402, %v94
    %v1404 = vpop.permute.xlu0 %1403
    %v1406 = vmul.f32 %v1400, %v1392
    %v1407 = vmul.f32 %v1404, %v1395
    %v1408 = vadd.f32 %v1211, %v1406
    %v1409 = vadd.f32 %v1212, %v1407
    %1410 = vst.msk [vmem:[#allocation10] sm:$0xff] %vm101, %v1408
    %1411 = vst.msk [vmem:[#allocation10 + $0x8] sm:$0xff] %vm101, %v1409
    // Predicated region
    $region54: #{tpu_custom_call.1} parent=1 // pred_check
      _
    $region55: #{tpu_custom_call.1} parent=1 // pred_check_branch
      %1413 = sbr.rel (0) target = $region57
    $region56: #{tpu_custom_call.1} parent=1 // pred_region
      %s1415 = ssub.s32 256, 256
      %1416 = vsyncadd [#allocation4], %s1415
      %s1417 = sshll.u32 [#allocation10], 4
      %s1418 = int_to_ptr.vmem [resolvable:$true] %s1417
      %1423 = dma.vmem_to_hbm [thread:$0]  %s1418, 256, %s9, [#allocation4], 128, 128, 8
    $region57: #{tpu_custom_call.1} parent=1 // pred_fallthru
      _
    // Predicated region
    $region58: #{tpu_custom_call.1} parent=1 // pred_check
      _
    $region59: #{tpu_custom_call.1} parent=1 // pred_check_branch
      %1425 = sbr.rel (0) target = $region61
    $region60: #{tpu_custom_call.1} parent=1 // pred_region
      %1426 = dma.done [#allocation4], 256
    $region61: #{tpu_custom_call.1} parent=1 // pred_fallthru
      _
    %1427 = vsyncpa [#allocation3], 1
    %1428 = vsyncpa [#allocation6], 1
    %1429 = vsyncpa [#allocation9], 1
    %1430 = vsyncpa [#allocation4], 1

</llo_original>
